<compile_context>
chip_gen: v7x
topology: tpu7x:2x2x1
jax: 0.10.0
libtpu: 0.0.40
codegen_flags: <defaults>
</compile_context>

<pallas_src>
import math

import jax
import jax.numpy as jnp
from jax.experimental import pallas as pl
from jax.experimental.pallas import tpu as pltpu

BN_EPS = 1e-5
LEAKY_SLOPE = 0.01

_VMEM = pl.BlockSpec(memory_space=pltpu.MemorySpace.VMEM)


def _round_up(x, m):
    return ((x + m - 1) // m) * m


def _pad_rows(a, target):
    pad = target - a.shape[0]
    if pad == 0:
        return a
    widths = [(0, pad)] + [(0, 0)] * (a.ndim - 1)
    return jnp.pad(a, widths)


# ----------------------------------------------------------------------------
# Kernel 1: fused mlp_geo  (localdepth x [Linear -> BatchNorm (batch stats,
#           masked to the real rows) -> ReLU]) — one pallas_call total.
# ----------------------------------------------------------------------------
def _make_geo_mlp_kernel(n_layers):
    def kernel(geo_ref, m_ref, *rest):
        out_ref = rest[-1]
        prm = rest[:-1]                      # 4 * n_layers refs: (w, b, g, beta)
        m = m_ref[...]                       # [E, 1] validity mask (0/1)
        cnt = jnp.maximum(jnp.sum(m), 1.0)
        x = geo_ref[...]                     # [E, 3] f32
        for l in range(n_layers):
            w, b, g, bt = prm[4 * l: 4 * l + 4]
            y = jnp.dot(x, w[...], preferred_element_type=jnp.float32) + b[...]
            mean = jnp.sum(y * m, axis=0, keepdims=True) / cnt
            var = jnp.sum(((y - mean) ** 2) * m, axis=0, keepdims=True) / cnt
            y = (y - mean) * jax.lax.rsqrt(var + BN_EPS) * g[...] + bt[...]
            x = jnp.maximum(y, 0.0)
        out_ref[...] = x
    return kernel


def geo_mlp(geo, valid_mask, layers):
    E = geo.shape[0]
    H = layers[-1][0].shape[1]
    flat = []
    for (w, b, g, bt) in layers:
        flat += [w, b.reshape(1, -1), g.reshape(1, -1), bt.reshape(1, -1)]
    return pl.pallas_call(
        _make_geo_mlp_kernel(len(layers)),
        out_shape=jax.ShapeDtypeStruct((E, H), jnp.float32),
        in_specs=[_VMEM] * (2 + len(flat)),
        out_specs=_VMEM,
    )(geo, valid_mask, *flat)


# ----------------------------------------------------------------------------
# Kernel 2: fully fused SPNN interaction block.
#   * 4 branches packed on the lane axis: activations are [E, 4*H] = [E, 128]
#   * per layer: bf16 matmul (packed weight) -> per-branch masked BN -> ReLU
#   * tail: leaky_relu * att[branch], masked (jnp.where), branch blocks summed
#   * scatter_add over destination node i as a one-hot bf16 matmul on the MXU
# ----------------------------------------------------------------------------
def _make_interaction_kernel(n_layers, h_dim):
    def kernel(x_ref, m_ref, onehot_ref, att_ref, *rest):
        out_ref = rest[-1]
        prm = rest[:-1]                                   # 4 * n_layers refs
        M = m_ref[...]                                    # [E, 4H] packed 0/1 mask
        cnt = jnp.maximum(jnp.sum(M, axis=0, keepdims=True), 1.0)   # [1, 4H]
        h = x_ref[...]                                    # [E, 4H] f32
        for l in range(n_layers):
            w, b, g, bt = prm[4 * l: 4 * l + 4]           # w is bf16 [Cin, 4H]
            y = jnp.dot(h.astype(jnp.bfloat16), w[...],
                        preferred_element_type=jnp.float32) + b[...]
            # per-branch BatchNorm batch statistics over the masked rows only
            mean = jnp.sum(y * M, axis=0, keepdims=True) / cnt
            var = jnp.sum(((y - mean) ** 2) * M, axis=0, keepdims=True) / cnt
            y = (y - mean) * jax.lax.rsqrt(var + BN_EPS) * g[...] + bt[...]
            h = jnp.maximum(y, 0.0)                       # ReLU
        # tail: leaky_relu(.) * att[idx] on the masked rows; where() (not a
        # plain multiply) guards empty-branch blow-up from ever producing NaN.
        lr = jnp.where(h >= 0, h, LEAKY_SLOPE * h)
        tail = jnp.where(M > 0, lr * att_ref[...], 0.0)   # [E, 4H]
        # sum the 4 branch blocks into x_output [E, H]
        x_out = (tail[:, 0 * h_dim:1 * h_dim]
                 + tail[:, 1 * h_dim:2 * h_dim]
                 + tail[:, 2 * h_dim:3 * h_dim]
                 + tail[:, 3 * h_dim:4 * h_dim])
        # scatter_add over node index i as a one-hot matmul (0/1 exact in bf16)
        out_ref[...] = jnp.dot(onehot_ref[...], x_out.astype(jnp.bfloat16),
                               preferred_element_type=jnp.float32)
    return kernel


def interaction_block(x_cat, mask_packed, onehot_bf16, att_packed, layers, h_dim):
    N = onehot_bf16.shape[0]
    flat = []
    for (w, b, g, bt) in layers:
        flat += [w, b, g, bt]
    return pl.pallas_call(
        _make_interaction_kernel(len(layers), h_dim),
        out_shape=jax.ShapeDtypeStruct((N, h_dim), jnp.float32),
        in_specs=[_VMEM] * (4 + len(flat)),
        out_specs=_VMEM,
    )(x_cat, mask_packed, onehot_bf16, att_packed, *flat)


# ----------------------------------------------------------------------------
# Parameter initialisation (deterministic, synthetic, torch-like: xavier
# weights, zero bias, BN gamma=1 / beta=0). Branch weights are packed for the
# fused kernel: layer 0 -> column concat, layers >0 -> block-diagonal.
# ----------------------------------------------------------------------------
def _xavier_uniform(key, fan_in, fan_out):
    bound = math.sqrt(6.0 / (fan_in + fan_out))
    return jax.random.uniform(key, (fan_in, fan_out), jnp.float32, -bound, bound)


def init_params(key, h_dim, localdepth, num_interactions, finaldepth):
    params = {"att": jnp.ones((4,), jnp.float32)}

    mlp_geo = []
    for li in range(localdepth):
        key, sub = jax.random.split(key)
        cin = 3 if li == 0 else h_dim          # sum(num_gaussians) = 3
        w = _xavier_uniform(sub, cin, h_dim)
        mlp_geo.append((w, jnp.zeros((h_dim,), jnp.float32),
                        jnp.ones((h_dim,), jnp.float32),
                        jnp.zeros((h_dim,), jnp.float32)))
    params["mlp_geo"] = mlp_geo

    interactions = []
    for _ in range(num_interactions):
        layers = []
        for li in range(finaldepth + 1):
            cin = (h_dim * 3 + h_dim) if li == 0 else h_dim
            ws = []
            for _ in range(4):
                key, sub = jax.random.split(key)
                ws.append(_xavier_uniform(sub, cin, h_dim))
            if li == 0:
                # all 4 branches share the same input x_cat -> concat columns
                w_packed = jnp.concatenate(ws, axis=1)            # [4H, 4H]
            else:
                # each branch only sees its own column block -> block diagonal
                w_packed = jnp.zeros((4 * h_dim, 4 * h_dim), jnp.float32)
                for b_i, wb in enumerate(ws):
                    w_packed = w_packed.at[b_i * h_dim:(b_i + 1) * h_dim,
                                           b_i * h_dim:(b_i + 1) * h_dim].set(wb)
            layers.append((w_packed.astype(jnp.bfloat16),          # MXU operand
                           jnp.zeros((1, 4 * h_dim), jnp.float32),
                           jnp.ones((1, 4 * h_dim), jnp.float32),
                           jnp.zeros((1, 4 * h_dim), jnp.float32)))
        interactions.append(layers)
    params["interactions"] = interactions
    return params


# ----------------------------------------------------------------------------
# Full forward. Geometry (cross / atan2) and the gathers/concat are tiny glue
# in plain JAX; everything heavy runs in the two fused Pallas kernels above.
# ----------------------------------------------------------------------------
def smodel_forward(params, input_feature, coords, edge_index_2rd, edx_jk, edx_ij,
                   num_edge_inside):
    i = edge_index_2rd[0]
    j = edge_index_2rd[1]
    k = edge_index_2rd[2]
    E = i.shape[0]
    N = coords.shape[0]
    H = input_feature.shape[1]

    E_pad = _round_up(E, 8)
    N_pad = _round_up(N, 8)

    # geometric features (get_angle = atan2(||v1 x v2||, v1 . v2))
    v_ij = coords[j] - coords[i]
    v_jk = coords[k] - coords[j]
    d_ij = jnp.sqrt(jnp.sum(v_ij ** 2, axis=1))
    d_jk = jnp.sqrt(jnp.sum((coords[j] - coords[k]) ** 2, axis=1))
    cross = jnp.cross(v_ij, v_jk)
    theta = jnp.arctan2(jnp.sqrt(jnp.sum(cross ** 2, axis=1)),
                        jnp.sum(v_ij * v_jk, axis=1))
    geo = jnp.stack([d_ij, d_jk, theta], axis=-1).astype(jnp.float32)   # [E, 3]
    geo = _pad_rows(geo, E_pad)

    valid = (jnp.arange(E_pad) < E).astype(jnp.float32)[:, None]        # [E_pad,1]
    geo_enc = geo_mlp(geo, valid, params["mlp_geo"])                    # [E_pad,H]

    # branch masks (partition of the real edges; padded rows are all-zero)
    m_ij_in = edx_ij < num_edge_inside
    m_jk_in = edx_jk < num_edge_inside
    masks4 = jnp.stack([
        m_ij_in & m_jk_in,
        m_ij_in & ~m_jk_in,
        ~m_ij_in & m_jk_in,
        ~m_ij_in & ~m_jk_in,
    ], axis=1).astype(jnp.float32)                                      # [E, 4]
    masks4 = _pad_rows(masks4, E_pad)
    mask_packed = jnp.repeat(masks4, H, axis=1)                         # [E_pad,4H]

    att_packed = jnp.repeat(params["att"].reshape(1, 4), H, axis=1)     # [1, 4H]

    # one-hot destination matrix for scatter_add(i) (0/1 -> exact in bf16).
    # Padded-edge columns point at node 0, but those x_output rows are 0.
    i_pad = _pad_rows(i, E_pad)
    j_pad = _pad_rows(j, E_pad)
    k_pad = _pad_rows(k, E_pad)
    onehot = (jnp.arange(N_pad)[:, None] == i_pad[None, :]).astype(jnp.bfloat16)

    node_feature = _pad_rows(input_feature.astype(jnp.float32), N_pad)  # [N_pad,H]
    outputs = []
    for layers in params["interactions"]:
        x_cat = jnp.concatenate([node_feature[i_pad], node_feature[j_pad],
                                 node_feature[k_pad], geo_enc], axis=-1)  # [E_pad,4H]
        node_feature = interaction_block(x_cat, mask_packed, onehot,
                                         att_packed, layers, H)          # [N_pad,H]
        outputs.append(node_feature[:N])
    return outputs


# ----------------------------------------------------------------------------
if __name__ == "__main__":
    # small config consistent with the module's constructor
    H_DIM = 32
    LOCALDEPTH = 1
    NUM_INTERACTIONS = 2
    FINALDEPTH = 2

    NUM_NODES = 10
    NUM_EDGES_2RD = 24      # number of 2nd-order edge triplets
    NUM_BASE_EDGES = 16
    NUM_EDGE_INSIDE = 8

    root = jax.random.PRNGKey(0)
    kp, kf, kc, ke, kjk, kij = jax.random.split(root, 6)

    params = init_params(kp, H_DIM, LOCALDEPTH, NUM_INTERACTIONS, FINALDEPTH)

    input_feature = jax.random.normal(kf, (NUM_NODES, H_DIM), jnp.float32)
    coords = jax.random.normal(kc, (NUM_NODES, 3), jnp.float32)
    edge_index_2rd = jax.random.randint(ke, (3, NUM_EDGES_2RD), 0, NUM_NODES,
                                        dtype=jnp.int32)
    edx_jk = jax.random.randint(kjk, (NUM_EDGES_2RD,), 0, NUM_BASE_EDGES,
                                dtype=jnp.int32)
    edx_ij = jax.random.randint(kij, (NUM_EDGES_2RD,), 0, NUM_BASE_EDGES,
                                dtype=jnp.int32)

    fwd = jax.jit(smodel_forward, static_argnums=(6,))
    outs = fwd(params, input_feature, coords, edge_index_2rd, edx_jk, edx_ij,
               NUM_EDGE_INSIDE)
    outs = jax.block_until_ready(outs)

    assert len(outs) == NUM_INTERACTIONS
    for o in outs:
        assert o.shape == (NUM_NODES, H_DIM)
        assert bool(jnp.all(jnp.isfinite(o)))
    print("KERNEL_OK")
</pallas_src>

<mosaic_0001>
module attributes {stable_mosaic.version = 11 : i64} {
  func.func @kernel(%arg0: memref<24x3xf32, #tpu.memory_space<vmem>>, %arg1: memref<24x1xf32, #tpu.memory_space<vmem>>, %arg2: memref<3x32xf32, #tpu.memory_space<vmem>>, %arg3: memref<1x32xf32, #tpu.memory_space<vmem>>, %arg4: memref<1x32xf32, #tpu.memory_space<vmem>>, %arg5: memref<1x32xf32, #tpu.memory_space<vmem>>, %arg6: memref<24x32xf32, #tpu.memory_space<vmem>>) attributes {dimension_semantics = [], scalar_prefetch = 0 : i64, scratch_operands = 0 : i64, tpu.core_type = #tpu.core_type<tc>} {
    %c0 = arith.constant 0 : index
    %c0_0 = arith.constant 0 : index
    %0 = vector.load %arg1[%c0, %c0_0] : memref<24x1xf32, #tpu.memory_space<vmem>>, vector<24x1xf32>
    %1 = vector.shape_cast %0 : vector<24x1xf32> to vector<1x24x1xf32>
    %cst = arith.constant dense<0.000000e+00> : vector<1xf32>
    %2 = vector.multi_reduction <add>, %1, %cst [1, 2] : vector<1x24x1xf32> to vector<1xf32>
    %3 = vector.shape_cast %2 : vector<1xf32> to vector<1x1x1xf32>
    %4 = vector.extract %3[0, 0, 0] : f32 from vector<1x1x1xf32>
    %cst_1 = arith.constant 1.000000e+00 : f32
    %5 = arith.maximumf %4, %cst_1 : f32
    %c0_2 = arith.constant 0 : index
    %c0_3 = arith.constant 0 : index
    %6 = vector.load %arg0[%c0_2, %c0_3] : memref<24x3xf32, #tpu.memory_space<vmem>>, vector<24x3xf32>
    %c0_4 = arith.constant 0 : index
    %c0_5 = arith.constant 0 : index
    %7 = vector.load %arg2[%c0_4, %c0_5] : memref<3x32xf32, #tpu.memory_space<vmem>>, vector<3x32xf32>
    %cst_6 = arith.constant dense<0.000000e+00> : vector<24x32xf32>
    %8 = tpu.matmul %6, %7, %cst_6 {dimension_numbers = #tpu.dot_dimension_numbers<[1], [0], [0], [1], [0, 0, 1, 1], [], []>} : vector<24x3xf32>, vector<3x32xf32>, vector<24x32xf32> -> vector<24x32xf32>
    %c0_7 = arith.constant 0 : index
    %c0_8 = arith.constant 0 : index
    %9 = vector.load %arg3[%c0_7, %c0_8] : memref<1x32xf32, #tpu.memory_space<vmem>>, vector<1x32xf32>
    %10 = vector.broadcast %9 : vector<1x32xf32> to vector<24x32xf32>
    %11 = arith.addf %8, %10 : vector<24x32xf32>
    %12 = vector.broadcast %0 : vector<24x1xf32> to vector<24x32xf32>
    %13 = arith.mulf %11, %12 : vector<24x32xf32>
    %cst_9 = arith.constant dense<0.000000e+00> : vector<32xf32>
    %14 = vector.multi_reduction <add>, %13, %cst_9 [0] : vector<24x32xf32> to vector<32xf32>
    %15 = vector.shape_cast %14 : vector<32xf32> to vector<1x32xf32>
    %16 = vector.broadcast %5 : f32 to vector<1x32xf32>
    %17 = arith.divf %15, %16 : vector<1x32xf32>
    %18 = vector.broadcast %17 : vector<1x32xf32> to vector<24x32xf32>
    %19 = arith.subf %11, %18 : vector<24x32xf32>
    %20 = arith.mulf %19, %19 : vector<24x32xf32>
    %21 = vector.broadcast %0 : vector<24x1xf32> to vector<24x32xf32>
    %22 = arith.mulf %20, %21 : vector<24x32xf32>
    %cst_10 = arith.constant dense<0.000000e+00> : vector<32xf32>
    %23 = vector.multi_reduction <add>, %22, %cst_10 [0] : vector<24x32xf32> to vector<32xf32>
    %24 = vector.shape_cast %23 : vector<32xf32> to vector<1x32xf32>
    %25 = vector.broadcast %5 : f32 to vector<1x32xf32>
    %26 = arith.divf %24, %25 : vector<1x32xf32>
    %27 = vector.broadcast %17 : vector<1x32xf32> to vector<24x32xf32>
    %28 = arith.subf %11, %27 : vector<24x32xf32>
    %cst_11 = arith.constant 9.99999974E-6 : f32
    %29 = vector.broadcast %cst_11 : f32 to vector<1x32xf32>
    %30 = arith.addf %26, %29 : vector<1x32xf32>
    %31 = math.rsqrt %30 : vector<1x32xf32>
    %32 = vector.broadcast %31 : vector<1x32xf32> to vector<24x32xf32>
    %33 = arith.mulf %28, %32 : vector<24x32xf32>
    %c0_12 = arith.constant 0 : index
    %c0_13 = arith.constant 0 : index
    %34 = vector.load %arg4[%c0_12, %c0_13] : memref<1x32xf32, #tpu.memory_space<vmem>>, vector<1x32xf32>
    %35 = vector.broadcast %34 : vector<1x32xf32> to vector<24x32xf32>
    %36 = arith.mulf %33, %35 : vector<24x32xf32>
    %c0_14 = arith.constant 0 : index
    %c0_15 = arith.constant 0 : index
    %37 = vector.load %arg5[%c0_14, %c0_15] : memref<1x32xf32, #tpu.memory_space<vmem>>, vector<1x32xf32>
    %38 = vector.broadcast %37 : vector<1x32xf32> to vector<24x32xf32>
    %39 = arith.addf %36, %38 : vector<24x32xf32>
    %cst_16 = arith.constant 0.000000e+00 : f32
    %40 = vector.broadcast %cst_16 : f32 to vector<24x32xf32>
    %41 = arith.maximumf %39, %40 : vector<24x32xf32>
    %c0_17 = arith.constant 0 : index
    %c0_18 = arith.constant 0 : index
    %42 = vector.load %arg6[%c0_17, %c0_18] : memref<24x32xf32, #tpu.memory_space<vmem>>, vector<24x32xf32>
    tpu.vector_store %arg6[%c0_17, %c0_18], %41 {strides = array<i32>} : memref<24x32xf32, #tpu.memory_space<vmem>>, vector<24x32xf32>,
    return
  }
}

module attributes {stable_mosaic.version = 11 : i64} {
  func.func @kernel(%arg0: memref<24x128xf32, #tpu.memory_space<vmem>>, %arg1: memref<24x128xf32, #tpu.memory_space<vmem>>, %arg2: memref<16x24xbf16, #tpu.memory_space<vmem>>, %arg3: memref<1x128xf32, #tpu.memory_space<vmem>>, %arg4: memref<128x128xbf16, #tpu.memory_space<vmem>>, %arg5: memref<1x128xf32, #tpu.memory_space<vmem>>, %arg6: memref<1x128xf32, #tpu.memory_space<vmem>>, %arg7: memref<1x128xf32, #tpu.memory_space<vmem>>, %arg8: memref<128x128xbf16, #tpu.memory_space<vmem>>, %arg9: memref<1x128xf32, #tpu.memory_space<vmem>>, %arg10: memref<1x128xf32, #tpu.memory_space<vmem>>, %arg11: memref<1x128xf32, #tpu.memory_space<vmem>>, %arg12: memref<128x128xbf16, #tpu.memory_space<vmem>>, %arg13: memref<1x128xf32, #tpu.memory_space<vmem>>, %arg14: memref<1x128xf32, #tpu.memory_space<vmem>>, %arg15: memref<1x128xf32, #tpu.memory_space<vmem>>, %arg16: memref<16x32xf32, #tpu.memory_space<vmem>>) attributes {dimension_semantics = [], scalar_prefetch = 0 : i64, scratch_operands = 0 : i64, tpu.core_type = #tpu.core_type<tc>} {
    %c0 = arith.constant 0 : index
    %c0_0 = arith.constant 0 : index
    %0 = vector.load %arg1[%c0, %c0_0] : memref<24x128xf32, #tpu.memory_space<vmem>>, vector<24x128xf32>
    %cst = arith.constant dense<0.000000e+00> : vector<128xf32>
    %1 = vector.multi_reduction <add>, %0, %cst [0] : vector<24x128xf32> to vector<128xf32>
    %2 = vector.shape_cast %1 : vector<128xf32> to vector<1x128xf32>
    %cst_1 = arith.constant 1.000000e+00 : f32
    %3 = vector.broadcast %cst_1 : f32 to vector<1x128xf32>
    %4 = arith.maximumf %2, %3 : vector<1x128xf32>
    %c0_2 = arith.constant 0 : index
    %c0_3 = arith.constant 0 : index
    %5 = vector.load %arg0[%c0_2, %c0_3] : memref<24x128xf32, #tpu.memory_space<vmem>>, vector<24x128xf32>
    %6 = arith.truncf %5 : vector<24x128xf32> to vector<24x128xbf16>
    %c0_4 = arith.constant 0 : index
    %c0_5 = arith.constant 0 : index
    %7 = vector.load %arg4[%c0_4, %c0_5] : memref<128x128xbf16, #tpu.memory_space<vmem>>, vector<128x128xbf16>
    %cst_6 = arith.constant dense<0.000000e+00> : vector<24x128xf32>
    %8 = tpu.matmul %6, %7, %cst_6 {dimension_numbers = #tpu.dot_dimension_numbers<[1], [0], [0], [1], [0, 0, 1, 1], [], []>} : vector<24x128xbf16>, vector<128x128xbf16>, vector<24x128xf32> -> vector<24x128xf32>
    %c0_7 = arith.constant 0 : index
    %c0_8 = arith.constant 0 : index
    %9 = vector.load %arg5[%c0_7, %c0_8] : memref<1x128xf32, #tpu.memory_space<vmem>>, vector<1x128xf32>
    %10 = vector.broadcast %9 : vector<1x128xf32> to vector<24x128xf32>
    %11 = arith.addf %8, %10 : vector<24x128xf32>
    %12 = arith.mulf %11, %0 : vector<24x128xf32>
    %cst_9 = arith.constant dense<0.000000e+00> : vector<128xf32>
    %13 = vector.multi_reduction <add>, %12, %cst_9 [0] : vector<24x128xf32> to vector<128xf32>
    %14 = vector.shape_cast %13 : vector<128xf32> to vector<1x128xf32>
    %15 = arith.divf %14, %4 : vector<1x128xf32>
    %16 = vector.broadcast %15 : vector<1x128xf32> to vector<24x128xf32>
    %17 = arith.subf %11, %16 : vector<24x128xf32>
    %18 = arith.mulf %17, %17 : vector<24x128xf32>
    %19 = arith.mulf %18, %0 : vector<24x128xf32>
    %cst_10 = arith.constant dense<0.000000e+00> : vector<128xf32>
    %20 = vector.multi_reduction <add>, %19, %cst_10 [0] : vector<24x128xf32> to vector<128xf32>
    %21 = vector.shape_cast %20 : vector<128xf32> to vector<1x128xf32>
    %22 = arith.divf %21, %4 : vector<1x128xf32>
    %23 = vector.broadcast %15 : vector<1x128xf32> to vector<24x128xf32>
    %24 = arith.subf %11, %23 : vector<24x128xf32>
    %cst_11 = arith.constant 9.99999974E-6 : f32
    %25 = vector.broadcast %cst_11 : f32 to vector<1x128xf32>
    %26 = arith.addf %22, %25 : vector<1x128xf32>
    %27 = math.rsqrt %26 : vector<1x128xf32>
    %28 = vector.broadcast %27 : vector<1x128xf32> to vector<24x128xf32>
    %29 = arith.mulf %24, %28 : vector<24x128xf32>
    %c0_12 = arith.constant 0 : index
    %c0_13 = arith.constant 0 : index
    %30 = vector.load %arg6[%c0_12, %c0_13] : memref<1x128xf32, #tpu.memory_space<vmem>>, vector<1x128xf32>
    %31 = vector.broadcast %30 : vector<1x128xf32> to vector<24x128xf32>
    %32 = arith.mulf %29, %31 : vector<24x128xf32>
    %c0_14 = arith.constant 0 : index
    %c0_15 = arith.constant 0 : index
    %33 = vector.load %arg7[%c0_14, %c0_15] : memref<1x128xf32, #tpu.memory_space<vmem>>, vector<1x128xf32>
    %34 = vector.broadcast %33 : vector<1x128xf32> to vector<24x128xf32>
    %35 = arith.addf %32, %34 : vector<24x128xf32>
    %cst_16 = arith.constant 0.000000e+00 : f32
    %36 = vector.broadcast %cst_16 : f32 to vector<24x128xf32>
    %37 = arith.maximumf %35, %36 : vector<24x128xf32>
    %38 = arith.truncf %37 : vector<24x128xf32> to vector<24x128xbf16>
    %c0_17 = arith.constant 0 : index
    %c0_18 = arith.constant 0 : index
    %39 = vector.load %arg8[%c0_17, %c0_18] : memref<128x128xbf16, #tpu.memory_space<vmem>>, vector<128x128xbf16>
    %cst_19 = arith.constant dense<0.000000e+00> : vector<24x128xf32>
    %40 = tpu.matmul %38, %39, %cst_19 {dimension_numbers = #tpu.dot_dimension_numbers<[1], [0], [0], [1], [0, 0, 1, 1], [], []>} : vector<24x128xbf16>, vector<128x128xbf16>, vector<24x128xf32> -> vector<24x128xf32>
    %c0_20 = arith.constant 0 : index
    %c0_21 = arith.constant 0 : index
    %41 = vector.load %arg9[%c0_20, %c0_21] : memref<1x128xf32, #tpu.memory_space<vmem>>, vector<1x128xf32>
    %42 = vector.broadcast %41 : vector<1x128xf32> to vector<24x128xf32>
    %43 = arith.addf %40, %42 : vector<24x128xf32>
    %44 = arith.mulf %43, %0 : vector<24x128xf32>
    %cst_22 = arith.constant dense<0.000000e+00> : vector<128xf32>
    %45 = vector.multi_reduction <add>, %44, %cst_22 [0] : vector<24x128xf32> to vector<128xf32>
    %46 = vector.shape_cast %45 : vector<128xf32> to vector<1x128xf32>
    %47 = arith.divf %46, %4 : vector<1x128xf32>
    %48 = vector.broadcast %47 : vector<1x128xf32> to vector<24x128xf32>
    %49 = arith.subf %43, %48 : vector<24x128xf32>
    %50 = arith.mulf %49, %49 : vector<24x128xf32>
    %51 = arith.mulf %50, %0 : vector<24x128xf32>
    %cst_23 = arith.constant dense<0.000000e+00> : vector<128xf32>
    %52 = vector.multi_reduction <add>, %51, %cst_23 [0] : vector<24x128xf32> to vector<128xf32>
    %53 = vector.shape_cast %52 : vector<128xf32> to vector<1x128xf32>
    %54 = arith.divf %53, %4 : vector<1x128xf32>
    %55 = vector.broadcast %47 : vector<1x128xf32> to vector<24x128xf32>
    %56 = arith.subf %43, %55 : vector<24x128xf32>
    %cst_24 = arith.constant 9.99999974E-6 : f32
    %57 = vector.broadcast %cst_24 : f32 to vector<1x128xf32>
    %58 = arith.addf %54, %57 : vector<1x128xf32>
    %59 = math.rsqrt %58 : vector<1x128xf32>
    %60 = vector.broadcast %59 : vector<1x128xf32> to vector<24x128xf32>
    %61 = arith.mulf %56, %60 : vector<24x128xf32>
    %c0_25 = arith.constant 0 : index
    %c0_26 = arith.constant 0 : index
    %62 = vector.load %arg10[%c0_25, %c0_26] : memref<1x128xf32, #tpu.memory_space<vmem>>, vector<1x128xf32>
    %63 = vector.broadcast %62 : vector<1x128xf32> to vector<24x128xf32>
    %64 = arith.mulf %61, %63 : vector<24x128xf32>
    %c0_27 = arith.constant 0 : index
    %c0_28 = arith.constant 0 : index
    %65 = vector.load %arg11[%c0_27, %c0_28] : memref<1x128xf32, #tpu.memory_space<vmem>>, vector<1x128xf32>
    %66 = vector.broadcast %65 : vector<1x128xf32> to vector<24x128xf32>
    %67 = arith.addf %64, %66 : vector<24x128xf32>
    %cst_29 = arith.constant 0.000000e+00 : f32
    %68 = vector.broadcast %cst_29 : f32 to vector<24x128xf32>
    %69 = arith.maximumf %67, %68 : vector<24x128xf32>
    %70 = arith.truncf %69 : vector<24x128xf32> to vector<24x128xbf16>
    %c0_30 = arith.constant 0 : index
    %c0_31 = arith.constant 0 : index
    %71 = vector.load %arg12[%c0_30, %c0_31] : memref<128x128xbf16, #tpu.memory_space<vmem>>, vector<128x128xbf16>
    %cst_32 = arith.constant dense<0.000000e+00> : vector<24x128xf32>
    %72 = tpu.matmul %70, %71, %cst_32 {dimension_numbers = #tpu.dot_dimension_numbers<[1], [0], [0], [1], [0, 0, 1, 1], [], []>} : vector<24x128xbf16>, vector<128x128xbf16>, vector<24x128xf32> -> vector<24x128xf32>
    %c0_33 = arith.constant 0 : index
    %c0_34 = arith.constant 0 : index
    %73 = vector.load %arg13[%c0_33, %c0_34] : memref<1x128xf32, #tpu.memory_space<vmem>>, vector<1x128xf32>
    %74 = vector.broadcast %73 : vector<1x128xf32> to vector<24x128xf32>
    %75 = arith.addf %72, %74 : vector<24x128xf32>
    %76 = arith.mulf %75, %0 : vector<24x128xf32>
    %cst_35 = arith.constant dense<0.000000e+00> : vector<128xf32>
    %77 = vector.multi_reduction <add>, %76, %cst_35 [0] : vector<24x128xf32> to vector<128xf32>
    %78 = vector.shape_cast %77 : vector<128xf32> to vector<1x128xf32>
    %79 = arith.divf %78, %4 : vector<1x128xf32>
    %80 = vector.broadcast %79 : vector<1x128xf32> to vector<24x128xf32>
    %81 = arith.subf %75, %80 : vector<24x128xf32>
    %82 = arith.mulf %81, %81 : vector<24x128xf32>
    %83 = arith.mulf %82, %0 : vector<24x128xf32>
    %cst_36 = arith.constant dense<0.000000e+00> : vector<128xf32>
    %84 = vector.multi_reduction <add>, %83, %cst_36 [0] : vector<24x128xf32> to vector<128xf32>
    %85 = vector.shape_cast %84 : vector<128xf32> to vector<1x128xf32>
    %86 = arith.divf %85, %4 : vector<1x128xf32>
    %87 = vector.broadcast %79 : vector<1x128xf32> to vector<24x128xf32>
    %88 = arith.subf %75, %87 : vector<24x128xf32>
    %cst_37 = arith.constant 9.99999974E-6 : f32
    %89 = vector.broadcast %cst_37 : f32 to vector<1x128xf32>
    %90 = arith.addf %86, %89 : vector<1x128xf32>
    %91 = math.rsqrt %90 : vector<1x128xf32>
    %92 = vector.broadcast %91 : vector<1x128xf32> to vector<24x128xf32>
    %93 = arith.mulf %88, %92 : vector<24x128xf32>
    %c0_38 = arith.constant 0 : index
    %c0_39 = arith.constant 0 : index
    %94 = vector.load %arg14[%c0_38, %c0_39] : memref<1x128xf32, #tpu.memory_space<vmem>>, vector<1x128xf32>
    %95 = vector.broadcast %94 : vector<1x128xf32> to vector<24x128xf32>
    %96 = arith.mulf %93, %95 : vector<24x128xf32>
    %c0_40 = arith.constant 0 : index
    %c0_41 = arith.constant 0 : index
    %97 = vector.load %arg15[%c0_40, %c0_41] : memref<1x128xf32, #tpu.memory_space<vmem>>, vector<1x128xf32>
    %98 = vector.broadcast %97 : vector<1x128xf32> to vector<24x128xf32>
    %99 = arith.addf %96, %98 : vector<24x128xf32>
    %cst_42 = arith.constant 0.000000e+00 : f32
    %100 = vector.broadcast %cst_42 : f32 to vector<24x128xf32>
    %101 = arith.maximumf %99, %100 : vector<24x128xf32>
    %cst_43 = arith.constant 0.000000e+00 : f32
    %102 = vector.broadcast %cst_43 : f32 to vector<24x128xf32>
    %103 = arith.cmpf oge, %101, %102 : vector<24x128xf32>
    %cst_44 = arith.constant 0.00999999977 : f32
    %104 = vector.broadcast %cst_44 : f32 to vector<24x128xf32>
    %105 = arith.mulf %104, %101 : vector<24x128xf32>
    %106 = arith.select %103, %101, %105 : vector<24x128xi1>, vector<24x128xf32>
    %cst_45 = arith.constant 0.000000e+00 : f32
    %107 = vector.broadcast %cst_45 : f32 to vector<24x128xf32>
    %108 = arith.cmpf ogt, %0, %107 : vector<24x128xf32>
    %c0_46 = arith.constant 0 : index
    %c0_47 = arith.constant 0 : index
    %109 = vector.load %arg3[%c0_46, %c0_47] : memref<1x128xf32, #tpu.memory_space<vmem>>, vector<1x128xf32>
    %110 = vector.broadcast %109 : vector<1x128xf32> to vector<24x128xf32>
    %111 = arith.mulf %106, %110 : vector<24x128xf32>
    %cst_48 = arith.constant 0.000000e+00 : f32
    %112 = vector.broadcast %cst_48 : f32 to vector<24x128xf32>
    %113 = arith.select %108, %111, %112 : vector<24x128xi1>, vector<24x128xf32>
    %114 = vector.extract_strided_slice %113 {offsets = [0, 0], sizes = [24, 32], strides = [1, 1]} : vector<24x128xf32> to vector<24x32xf32>
    %115 = vector.extract_strided_slice %113 {offsets = [0, 32], sizes = [24, 32], strides = [1, 1]} : vector<24x128xf32> to vector<24x32xf32>
    %116 = arith.addf %114, %115 : vector<24x32xf32>
    %117 = vector.extract_strided_slice %113 {offsets = [0, 64], sizes = [24, 32], strides = [1, 1]} : vector<24x128xf32> to vector<24x32xf32>
    %118 = arith.addf %116, %117 : vector<24x32xf32>
    %119 = vector.extract_strided_slice %113 {offsets = [0, 96], sizes = [24, 32], strides = [1, 1]} : vector<24x128xf32> to vector<24x32xf32>
    %120 = arith.addf %118, %119 : vector<24x32xf32>
    %c0_49 = arith.constant 0 : index
    %c0_50 = arith.constant 0 : index
    %121 = vector.load %arg2[%c0_49, %c0_50] : memref<16x24xbf16, #tpu.memory_space<vmem>>, vector<16x24xbf16>
    %122 = arith.truncf %120 : vector<24x32xf32> to vector<24x32xbf16>
    %cst_51 = arith.constant dense<0.000000e+00> : vector<16x32xf32>
    %123 = tpu.matmul %121, %122, %cst_51 {dimension_numbers = #tpu.dot_dimension_numbers<[1], [0], [0], [1], [0, 0, 1, 1], [], []>} : vector<16x24xbf16>, vector<24x32xbf16>, vector<16x32xf32> -> vector<16x32xf32>
    %c0_52 = arith.constant 0 : index
    %c0_53 = arith.constant 0 : index
    %124 = vector.load %arg16[%c0_52, %c0_53] : memref<16x32xf32, #tpu.memory_space<vmem>>, vector<16x32xf32>
    tpu.vector_store %arg16[%c0_52, %c0_53], %123 {strides = array<i32>} : memref<16x32xf32, #tpu.memory_space<vmem>>, vector<16x32xf32>,
    return
  }
}

module attributes {stable_mosaic.version = 11 : i64} {
  func.func @kernel(%arg0: memref<24x128xf32, #tpu.memory_space<vmem>>, %arg1: memref<24x128xf32, #tpu.memory_space<vmem>>, %arg2: memref<16x24xbf16, #tpu.memory_space<vmem>>, %arg3: memref<1x128xf32, #tpu.memory_space<vmem>>, %arg4: memref<128x128xbf16, #tpu.memory_space<vmem>>, %arg5: memref<1x128xf32, #tpu.memory_space<vmem>>, %arg6: memref<1x128xf32, #tpu.memory_space<vmem>>, %arg7: memref<1x128xf32, #tpu.memory_space<vmem>>, %arg8: memref<128x128xbf16, #tpu.memory_space<vmem>>, %arg9: memref<1x128xf32, #tpu.memory_space<vmem>>, %arg10: memref<1x128xf32, #tpu.memory_space<vmem>>, %arg11: memref<1x128xf32, #tpu.memory_space<vmem>>, %arg12: memref<128x128xbf16, #tpu.memory_space<vmem>>, %arg13: memref<1x128xf32, #tpu.memory_space<vmem>>, %arg14: memref<1x128xf32, #tpu.memory_space<vmem>>, %arg15: memref<1x128xf32, #tpu.memory_space<vmem>>, %arg16: memref<16x32xf32, #tpu.memory_space<vmem>>) attributes {dimension_semantics = [], scalar_prefetch = 0 : i64, scratch_operands = 0 : i64, tpu.core_type = #tpu.core_type<tc>} {
    %c0 = arith.constant 0 : index
    %c0_0 = arith.constant 0 : index
    %0 = vector.load %arg1[%c0, %c0_0] : memref<24x128xf32, #tpu.memory_space<vmem>>, vector<24x128xf32>
    %cst = arith.constant dense<0.000000e+00> : vector<128xf32>
    %1 = vector.multi_reduction <add>, %0, %cst [0] : vector<24x128xf32> to vector<128xf32>
    %2 = vector.shape_cast %1 : vector<128xf32> to vector<1x128xf32>
    %cst_1 = arith.constant 1.000000e+00 : f32
    %3 = vector.broadcast %cst_1 : f32 to vector<1x128xf32>
    %4 = arith.maximumf %2, %3 : vector<1x128xf32>
    %c0_2 = arith.constant 0 : index
    %c0_3 = arith.constant 0 : index
    %5 = vector.load %arg0[%c0_2, %c0_3] : memref<24x128xf32, #tpu.memory_space<vmem>>, vector<24x128xf32>
    %6 = arith.truncf %5 : vector<24x128xf32> to vector<24x128xbf16>
    %c0_4 = arith.constant 0 : index
    %c0_5 = arith.constant 0 : index
    %7 = vector.load %arg4[%c0_4, %c0_5] : memref<128x128xbf16, #tpu.memory_space<vmem>>, vector<128x128xbf16>
    %cst_6 = arith.constant dense<0.000000e+00> : vector<24x128xf32>
    %8 = tpu.matmul %6, %7, %cst_6 {dimension_numbers = #tpu.dot_dimension_numbers<[1], [0], [0], [1], [0, 0, 1, 1], [], []>} : vector<24x128xbf16>, vector<128x128xbf16>, vector<24x128xf32> -> vector<24x128xf32>
    %c0_7 = arith.constant 0 : index
    %c0_8 = arith.constant 0 : index
    %9 = vector.load %arg5[%c0_7, %c0_8] : memref<1x128xf32, #tpu.memory_space<vmem>>, vector<1x128xf32>
    %10 = vector.broadcast %9 : vector<1x128xf32> to vector<24x128xf32>
    %11 = arith.addf %8, %10 : vector<24x128xf32>
    %12 = arith.mulf %11, %0 : vector<24x128xf32>
    %cst_9 = arith.constant dense<0.000000e+00> : vector<128xf32>
    %13 = vector.multi_reduction <add>, %12, %cst_9 [0] : vector<24x128xf32> to vector<128xf32>
    %14 = vector.shape_cast %13 : vector<128xf32> to vector<1x128xf32>
    %15 = arith.divf %14, %4 : vector<1x128xf32>
    %16 = vector.broadcast %15 : vector<1x128xf32> to vector<24x128xf32>
    %17 = arith.subf %11, %16 : vector<24x128xf32>
    %18 = arith.mulf %17, %17 : vector<24x128xf32>
    %19 = arith.mulf %18, %0 : vector<24x128xf32>
    %cst_10 = arith.constant dense<0.000000e+00> : vector<128xf32>
    %20 = vector.multi_reduction <add>, %19, %cst_10 [0] : vector<24x128xf32> to vector<128xf32>
    %21 = vector.shape_cast %20 : vector<128xf32> to vector<1x128xf32>
    %22 = arith.divf %21, %4 : vector<1x128xf32>
    %23 = vector.broadcast %15 : vector<1x128xf32> to vector<24x128xf32>
    %24 = arith.subf %11, %23 : vector<24x128xf32>
    %cst_11 = arith.constant 9.99999974E-6 : f32
    %25 = vector.broadcast %cst_11 : f32 to vector<1x128xf32>
    %26 = arith.addf %22, %25 : vector<1x128xf32>
    %27 = math.rsqrt %26 : vector<1x128xf32>
    %28 = vector.broadcast %27 : vector<1x128xf32> to vector<24x128xf32>
    %29 = arith.mulf %24, %28 : vector<24x128xf32>
    %c0_12 = arith.constant 0 : index
    %c0_13 = arith.constant 0 : index
    %30 = vector.load %arg6[%c0_12, %c0_13] : memref<1x128xf32, #tpu.memory_space<vmem>>, vector<1x128xf32>
    %31 = vector.broadcast %30 : vector<1x128xf32> to vector<24x128xf32>
    %32 = arith.mulf %29, %31 : vector<24x128xf32>
    %c0_14 = arith.constant 0 : index
    %c0_15 = arith.constant 0 : index
    %33 = vector.load %arg7[%c0_14, %c0_15] : memref<1x128xf32, #tpu.memory_space<vmem>>, vector<1x128xf32>
    %34 = vector.broadcast %33 : vector<1x128xf32> to vector<24x128xf32>
    %35 = arith.addf %32, %34 : vector<24x128xf32>
    %cst_16 = arith.constant 0.000000e+00 : f32
    %36 = vector.broadcast %cst_16 : f32 to vector<24x128xf32>
    %37 = arith.maximumf %35, %36 : vector<24x128xf32>
    %38 = arith.truncf %37 : vector<24x128xf32> to vector<24x128xbf16>
    %c0_17 = arith.constant 0 : index
    %c0_18 = arith.constant 0 : index
    %39 = vector.load %arg8[%c0_17, %c0_18] : memref<128x128xbf16, #tpu.memory_space<vmem>>, vector<128x128xbf16>
    %cst_19 = arith.constant dense<0.000000e+00> : vector<24x128xf32>
    %40 = tpu.matmul %38, %39, %cst_19 {dimension_numbers = #tpu.dot_dimension_numbers<[1], [0], [0], [1], [0, 0, 1, 1], [], []>} : vector<24x128xbf16>, vector<128x128xbf16>, vector<24x128xf32> -> vector<24x128xf32>
    %c0_20 = arith.constant 0 : index
    %c0_21 = arith.constant 0 : index
    %41 = vector.load %arg9[%c0_20, %c0_21] : memref<1x128xf32, #tpu.memory_space<vmem>>, vector<1x128xf32>
    %42 = vector.broadcast %41 : vector<1x128xf32> to vector<24x128xf32>
    %43 = arith.addf %40, %42 : vector<24x128xf32>
    %44 = arith.mulf %43, %0 : vector<24x128xf32>
    %cst_22 = arith.constant dense<0.000000e+00> : vector<128xf32>
    %45 = vector.multi_reduction <add>, %44, %cst_22 [0] : vector<24x128xf32> to vector<128xf32>
    %46 = vector.shape_cast %45 : vector<128xf32> to vector<1x128xf32>
    %47 = arith.divf %46, %4 : vector<1x128xf32>
    %48 = vector.broadcast %47 : vector<1x128xf32> to vector<24x128xf32>
    %49 = arith.subf %43, %48 : vector<24x128xf32>
    %50 = arith.mulf %49, %49 : vector<24x128xf32>
    %51 = arith.mulf %50, %0 : vector<24x128xf32>
    %cst_23 = arith.constant dense<0.000000e+00> : vector<128xf32>
    %52 = vector.multi_reduction <add>, %51, %cst_23 [0] : vector<24x128xf32> to vector<128xf32>
    %53 = vector.shape_cast %52 : vector<128xf32> to vector<1x128xf32>
    %54 = arith.divf %53, %4 : vector<1x128xf32>
    %55 = vector.broadcast %47 : vector<1x128xf32> to vector<24x128xf32>
    %56 = arith.subf %43, %55 : vector<24x128xf32>
    %cst_24 = arith.constant 9.99999974E-6 : f32
    %57 = vector.broadcast %cst_24 : f32 to vector<1x128xf32>
    %58 = arith.addf %54, %57 : vector<1x128xf32>
    %59 = math.rsqrt %58 : vector<1x128xf32>
    %60 = vector.broadcast %59 : vector<1x128xf32> to vector<24x128xf32>
    %61 = arith.mulf %56, %60 : vector<24x128xf32>
    %c0_25 = arith.constant 0 : index
    %c0_26 = arith.constant 0 : index
    %62 = vector.load %arg10[%c0_25, %c0_26] : memref<1x128xf32, #tpu.memory_space<vmem>>, vector<1x128xf32>
    %63 = vector.broadcast %62 : vector<1x128xf32> to vector<24x128xf32>
    %64 = arith.mulf %61, %63 : vector<24x128xf32>
    %c0_27 = arith.constant 0 : index
    %c0_28 = arith.constant 0 : index
    %65 = vector.load %arg11[%c0_27, %c0_28] : memref<1x128xf32, #tpu.memory_space<vmem>>, vector<1x128xf32>
    %66 = vector.broadcast %65 : vector<1x128xf32> to vector<24x128xf32>
    %67 = arith.addf %64, %66 : vector<24x128xf32>
    %cst_29 = arith.constant 0.000000e+00 : f32
    %68 = vector.broadcast %cst_29 : f32 to vector<24x128xf32>
    %69 = arith.maximumf %67, %68 : vector<24x128xf32>
    %70 = arith.truncf %69 : vector<24x128xf32> to vector<24x128xbf16>
    %c0_30 = arith.constant 0 : index
    %c0_31 = arith.constant 0 : index
    %71 = vector.load %arg12[%c0_30, %c0_31] : memref<128x128xbf16, #tpu.memory_space<vmem>>, vector<128x128xbf16>
    %cst_32 = arith.constant dense<0.000000e+00> : vector<24x128xf32>
    %72 = tpu.matmul %70, %71, %cst_32 {dimension_numbers = #tpu.dot_dimension_numbers<[1], [0], [0], [1], [0, 0, 1, 1], [], []>} : vector<24x128xbf16>, vector<128x128xbf16>, vector<24x128xf32> -> vector<24x128xf32>
    %c0_33 = arith.constant 0 : index
    %c0_34 = arith.constant 0 : index
    %73 = vector.load %arg13[%c0_33, %c0_34] : memref<1x128xf32, #tpu.memory_space<vmem>>, vector<1x128xf32>
    %74 = vector.broadcast %73 : vector<1x128xf32> to vector<24x128xf32>
    %75 = arith.addf %72, %74 : vector<24x128xf32>
    %76 = arith.mulf %75, %0 : vector<24x128xf32>
    %cst_35 = arith.constant dense<0.000000e+00> : vector<128xf32>
    %77 = vector.multi_reduction <add>, %76, %cst_35 [0] : vector<24x128xf32> to vector<128xf32>
    %78 = vector.shape_cast %77 : vector<128xf32> to vector<1x128xf32>
    %79 = arith.divf %78, %4 : vector<1x128xf32>
    %80 = vector.broadcast %79 : vector<1x128xf32> to vector<24x128xf32>
    %81 = arith.subf %75, %80 : vector<24x128xf32>
    %82 = arith.mulf %81, %81 : vector<24x128xf32>
    %83 = arith.mulf %82, %0 : vector<24x128xf32>
    %cst_36 = arith.constant dense<0.000000e+00> : vector<128xf32>
    %84 = vector.multi_reduction <add>, %83, %cst_36 [0] : vector<24x128xf32> to vector<128xf32>
    %85 = vector.shape_cast %84 : vector<128xf32> to vector<1x128xf32>
    %86 = arith.divf %85, %4 : vector<1x128xf32>
    %87 = vector.broadcast %79 : vector<1x128xf32> to vector<24x128xf32>
    %88 = arith.subf %75, %87 : vector<24x128xf32>
    %cst_37 = arith.constant 9.99999974E-6 : f32
    %89 = vector.broadcast %cst_37 : f32 to vector<1x128xf32>
    %90 = arith.addf %86, %89 : vector<1x128xf32>
    %91 = math.rsqrt %90 : vector<1x128xf32>
    %92 = vector.broadcast %91 : vector<1x128xf32> to vector<24x128xf32>
    %93 = arith.mulf %88, %92 : vector<24x128xf32>
    %c0_38 = arith.constant 0 : index
    %c0_39 = arith.constant 0 : index
    %94 = vector.load %arg14[%c0_38, %c0_39] : memref<1x128xf32, #tpu.memory_space<vmem>>, vector<1x128xf32>
    %95 = vector.broadcast %94 : vector<1x128xf32> to vector<24x128xf32>
    %96 = arith.mulf %93, %95 : vector<24x128xf32>
    %c0_40 = arith.constant 0 : index
    %c0_41 = arith.constant 0 : index
    %97 = vector.load %arg15[%c0_40, %c0_41] : memref<1x128xf32, #tpu.memory_space<vmem>>, vector<1x128xf32>
    %98 = vector.broadcast %97 : vector<1x128xf32> to vector<24x128xf32>
    %99 = arith.addf %96, %98 : vector<24x128xf32>
    %cst_42 = arith.constant 0.000000e+00 : f32
    %100 = vector.broadcast %cst_42 : f32 to vector<24x128xf32>
    %101 = arith.maximumf %99, %100 : vector<24x128xf32>
    %cst_43 = arith.constant 0.000000e+00 : f32
    %102 = vector.broadcast %cst_43 : f32 to vector<24x128xf32>
    %103 = arith.cmpf oge, %101, %102 : vector<24x128xf32>
    %cst_44 = arith.constant 0.00999999977 : f32
    %104 = vector.broadcast %cst_44 : f32 to vector<24x128xf32>
    %105 = arith.mulf %104, %101 : vector<24x128xf32>
    %106 = arith.select %103, %101, %105 : vector<24x128xi1>, vector<24x128xf32>
    %cst_45 = arith.constant 0.000000e+00 : f32
    %107 = vector.broadcast %cst_45 : f32 to vector<24x128xf32>
    %108 = arith.cmpf ogt, %0, %107 : vector<24x128xf32>
    %c0_46 = arith.constant 0 : index
    %c0_47 = arith.constant 0 : index
    %109 = vector.load %arg3[%c0_46, %c0_47] : memref<1x128xf32, #tpu.memory_space<vmem>>, vector<1x128xf32>
    %110 = vector.broadcast %109 : vector<1x128xf32> to vector<24x128xf32>
    %111 = arith.mulf %106, %110 : vector<24x128xf32>
    %cst_48 = arith.constant 0.000000e+00 : f32
    %112 = vector.broadcast %cst_48 : f32 to vector<24x128xf32>
    %113 = arith.select %108, %111, %112 : vector<24x128xi1>, vector<24x128xf32>
    %114 = vector.extract_strided_slice %113 {offsets = [0, 0], sizes = [24, 32], strides = [1, 1]} : vector<24x128xf32> to vector<24x32xf32>
    %115 = vector.extract_strided_slice %113 {offsets = [0, 32], sizes = [24, 32], strides = [1, 1]} : vector<24x128xf32> to vector<24x32xf32>
    %116 = arith.addf %114, %115 : vector<24x32xf32>
    %117 = vector.extract_strided_slice %113 {offsets = [0, 64], sizes = [24, 32], strides = [1, 1]} : vector<24x128xf32> to vector<24x32xf32>
    %118 = arith.addf %116, %117 : vector<24x32xf32>
    %119 = vector.extract_strided_slice %113 {offsets = [0, 96], sizes = [24, 32], strides = [1, 1]} : vector<24x128xf32> to vector<24x32xf32>
    %120 = arith.addf %118, %119 : vector<24x32xf32>
    %c0_49 = arith.constant 0 : index
    %c0_50 = arith.constant 0 : index
    %121 = vector.load %arg2[%c0_49, %c0_50] : memref<16x24xbf16, #tpu.memory_space<vmem>>, vector<16x24xbf16>
    %122 = arith.truncf %120 : vector<24x32xf32> to vector<24x32xbf16>
    %cst_51 = arith.constant dense<0.000000e+00> : vector<16x32xf32>
    %123 = tpu.matmul %121, %122, %cst_51 {dimension_numbers = #tpu.dot_dimension_numbers<[1], [0], [0], [1], [0, 0, 1, 1], [], []>} : vector<16x24xbf16>, vector<24x32xbf16>, vector<16x32xf32> -> vector<16x32xf32>
    %c0_52 = arith.constant 0 : index
    %c0_53 = arith.constant 0 : index
    %124 = vector.load %arg16[%c0_52, %c0_53] : memref<16x32xf32, #tpu.memory_space<vmem>>, vector<16x32xf32>
    tpu.vector_store %arg16[%c0_52, %c0_53], %123 {strides = array<i32>} : memref<16x32xf32, #tpu.memory_space<vmem>>, vector<16x32xf32>,
    return
  }
}

</mosaic_0001>

<llo_original>
// kernel: smodel_forward.3
$region0: #{smodel_forward.3}
  #allocation0 [shape = 'u32[]', space=smem, size = 0x4, offset = 0x4, fixed_abs, tag = 'smem constant byte address 0x4 - core index']
  #allocation1 [shape = 'u32[144,128]{1,0:T(1,128)}', space=vmem, size = 0x12000, scoped, tag = 'internal scratch']
  %s0 = inlined_call_operand.vmem [shape: f32[24,3], index: 0, kind: input, shape index: {}]
  %s1 = inlined_call_operand.vmem [shape: f32[24,1], index: 1, kind: input, shape index: {}]
  %s2 = inlined_call_operand.vmem [shape: f32[3,32], index: 2, kind: input, shape index: {}]
  %s3 = inlined_call_operand.vmem [shape: f32[1,32], index: 3, kind: input, shape index: {}]
  %s4 = inlined_call_operand.vmem [shape: f32[1,32], index: 4, kind: input, shape index: {}]
  %s5 = inlined_call_operand.vmem [shape: f32[1,32], index: 5, kind: input, shape index: {}]
  %s6 = inlined_call_operand.vmem [shape: f32[24,32], index: 6, kind: output, shape index: {}]
  %s7 = sld [smem:[#allocation0]]
  $region34: #{smodel_forward.3} parent=0
    _
  %s9 = ssub.s32 1, %s7
  %s10 = scalar_select 0, %s9, %s7
  // Predicated region
  $region2: #{smodel_forward.3} parent=0 // pred_check
    _
  $region3: #{smodel_forward.3} parent=0 // pred_check_branch
    %12 = sbr.rel (0) target = $region5
  $region4: #{smodel_forward.3} parent=0 // pred_region
    _
  $region5: #{smodel_forward.3} parent=0 // pred_fallthru
    _
  // Predicated region
  $region6: #{smodel_forward.3} parent=0 // pred_check
    _
  $region7: #{smodel_forward.3} parent=0 // pred_check_branch
    %14 = sbr.rel (0) target = $region9
  $region8: #{smodel_forward.3} parent=0 // pred_region
    _
  $region9: #{smodel_forward.3} parent=0 // pred_fallthru
    _
  // Predicated region
  $region10: #{smodel_forward.3} parent=0 // pred_check
    _
  $region11: #{smodel_forward.3} parent=0 // pred_check_branch
    %16 = sbr.rel (0) target = $region13
  $region12: #{smodel_forward.3} parent=0 // pred_region
    _
  $region13: #{smodel_forward.3} parent=0 // pred_fallthru
    _
  // Predicated region
  $region14: #{smodel_forward.3} parent=0 // pred_check
    _
  $region15: #{smodel_forward.3} parent=0 // pred_check_branch
    %18 = sbr.rel (0) target = $region17
  $region16: #{smodel_forward.3} parent=0 // pred_region
    _
  $region17: #{smodel_forward.3} parent=0 // pred_fallthru
    _
  // Predicated region
  $region18: #{smodel_forward.3} parent=0 // pred_check
    _
  $region19: #{smodel_forward.3} parent=0 // pred_check_branch
    %20 = sbr.rel (0) target = $region21
  $region20: #{smodel_forward.3} parent=0 // pred_region
    _
  $region21: #{smodel_forward.3} parent=0 // pred_fallthru
    _
  // Predicated region
  $region22: #{smodel_forward.3} parent=0 // pred_check
    _
  $region23: #{smodel_forward.3} parent=0 // pred_check_branch
    %22 = sbr.rel (0) target = $region25
  $region24: #{smodel_forward.3} parent=0 // pred_region
    _
  $region25: #{smodel_forward.3} parent=0 // pred_fallthru
    _
  %v23 = vld [vmem:[%s1] sm:$0xff]
  %v24 = vld [vmem:[%s1 + $0x8] sm:$0xff]
  %v25 = vld [vmem:[%s1 + $0x10] sm:$0xff]
  %vm26 = vcmask 7168
  %v27 = vsel %vm26, %v23, 0.0
  %v28 = vsel %vm26, %v24, 0.0
  %v29 = vadd.f32 %v27, %v28
  %v30 = vsel %vm26, %v25, 0.0
  %v31 = vadd.f32 %v29, %v30
  %32 = vadd.xlane.f32.xlu0 %v31
  %v33 = vpop.xlane.xlu0 %32
  %v34 = vrot.slane %v33, 4
  %v35 = vadd.f32 %v33, %v34
  %v36 = vrot.slane %v35, 2
  %v37 = vadd.f32 %v35, %v36
  %v38 = vrot.slane %v37, 1
  %v39 = vadd.f32 %v37, %v38
  %s40 = vtos %v39
  %s41 = smax.f32 %s40, 1.0
  %v42 = vld [vmem:[%s0] sm:$0xff]
  %v43 = vld [vmem:[%s0 + $0x8] sm:$0xff]
  %v44 = vld [vmem:[%s0 + $0x10] sm:$0xff]
  %v45 = vld [vmem:[%s2] sm:$0x7]
  %v46 = vld [vmem:[%s3] sm:$0x1]
  %v48 = vlaneseq
  %v49 = vshrl.u32 %v48, 7
  %v50 = vsub.s32 0, %v49
  %v51 = vrot.slane %v46, %v50
  %vm53 = vcmask 23552
  %v55 = vsel %vm53, %v42, 0
  %v58 = vsel %vm53, %v43, 0
  %v61 = vsel %vm53, %v44, 0
  %vm63 = vcmask 1042432
  %v65 = vsel %vm63, %v45, 0
  %67 = vmatprep.subr.mxu0 0.0
  %68 = vmatpush1.msra.mxu0 %v65
  %69 = vmatprep.subr.mxu0 0.0
  %70 = vmatpush1.msra.mxu0 0.0
  %71 = vmatprep.subr.mxu0 0.0
  %72 = vmatpush1.msra.mxu0 0.0
  %73 = vmatprep.subr.mxu0 0.0
  %74 = vmatpush1.msra.mxu0 0.0
  %75 = vmatprep.subr.mxu0 0.0
  %76 = vmatpush1.msra.mxu0 0.0
  %77 = vmatprep.subr.mxu0 0.0
  %78 = vmatpush1.msra.mxu0 0.0
  %79 = vmatprep.subr.mxu0 0.0
  %80 = vmatpush1.msra.mxu0 0.0
  %81 = vmatprep.subr.mxu0 0.0
  %82 = vmatpush1.msra.mxu0 0.0
  %83 = vmatprep.subr.mxu0 0.0
  %84 = vmatpush1.msra.mxu0 0.0
  %85 = vmatprep.subr.mxu0 0.0
  %86 = vmatpush1.msra.mxu0 0.0
  %87 = vmatprep.subr.mxu0 0.0
  %88 = vmatpush1.msra.mxu0 0.0
  %89 = vmatprep.subr.mxu0 0.0
  %90 = vmatpush1.msra.mxu0 0.0
  %91 = vmatprep.subr.mxu0 0.0
  %92 = vmatpush1.msra.mxu0 0.0
  %93 = vmatprep.subr.mxu0 0.0
  %94 = vmatpush1.msra.mxu0 0.0
  %95 = vmatprep.subr.mxu0 0.0
  %96 = vmatpush1.msra.mxu0 0.0
  %97 = vmatprep.subr.mxu0 0.0
  %98 = vmatpush1.msra.mxu0 0.0
  %99 = vmatprep.subr.mxu0 0.0
  %100 = vmatpush1.msra.mxu0 0.0
  %101 = vmatprep.subr.mxu0 0.0
  %102 = vmatpush1.msra.mxu0 0.0
  %103 = vmatprep.subr.mxu0 0.0
  %104 = vmatpush1.msra.mxu0 0.0
  %105 = vmatprep.subr.mxu0 0.0
  %106 = vmatpush1.msra.mxu0 0.0
  %107 = vmatprep.subr.mxu0 0.0
  %108 = vmatpush1.msra.mxu0 0.0
  %109 = vmatprep.subr.mxu0 0.0
  %110 = vmatpush1.msra.mxu0 0.0
  %111 = vmatprep.subr.mxu0 0.0
  %112 = vmatpush1.msra.mxu0 0.0
  %113 = vmatprep.subr.mxu0 0.0
  %114 = vmatpush1.msra.mxu0 0.0
  %115 = vmatprep.subr.mxu0 0.0
  %116 = vmatpush1.msra.mxu0 0.0
  %117 = vmatprep.subr.mxu0 0.0
  %118 = vmatpush1.msra.mxu0 0.0
  %119 = vmatprep.subr.mxu0 0.0
  %120 = vmatpush1.msra.mxu0 0.0
  %121 = vmatprep.subr.mxu0 0.0
  %122 = vmatpush1.msra.mxu0 0.0
  %123 = vmatprep.subr.mxu0 0.0
  %124 = vmatpush1.msra.mxu0 0.0
  %125 = vmatprep.subr.mxu0 0.0
  %126 = vmatpush1.msra.mxu0 0.0
  %127 = vmatprep.subr.mxu0 0.0
  %128 = vmatpush1.msra.mxu0 0.0
  %129 = vmatprep.subr.mxu0 0.0
  %130 = vmatpush1.msra.mxu0 0.0
  %131 = vmatprep.mubr.f32.mxu0 0.0
  %132 = vmatmul.mubr.f32.gmra.mrb[0].mxu0 %v55
  %v133 = vpop.f32.mrb[0].mxu0
  %v134 = vadd.f32 %v51, %v133
  %v135 = vpop.f32.mrb[0].mxu0
  %136 = vmatprep.mubr.f32.mxu0 0.0
  %137 = vmatmul.mubr.f32.gmra.mrb[0].mxu0 %v58
  %v138 = vpop.f32.mrb[0].mxu0
  %v139 = vadd.f32 %v51, %v138
  %v140 = vpop.f32.mrb[0].mxu0
  %141 = vmatprep.mubr.f32.mxu0 0.0
  %142 = vmatmul.mubr.f32.gmra.mrb[0].mxu0 %v61
  %v143 = vpop.f32.mrb[0].mxu0
  %v144 = vadd.f32 %v51, %v143
  %v145 = vpop.f32.mrb[0].mxu0
  %146 = vdwg.mxu0
  %148 = vset.pattern.permute.xlu0 0
  %149 = vperm.xlu0 %148, %v23
  %v150 = vpop.permute.xlu0 %149
  %153 = vset.pattern.permute.xlu0 0
  %154 = vperm.xlu0 %153, %v24
  %v155 = vpop.permute.xlu0 %154
  %158 = vset.pattern.permute.xlu0 0
  %159 = vperm.xlu0 %158, %v25
  %v160 = vpop.permute.xlu0 %159
  %v162 = vmul.f32 %v134, %v150
  %v163 = vmul.f32 %v139, %v155
  %v164 = vmul.f32 %v144, %v160
  %vm165 = vcmask 261120
  %v166 = vsel %vm165, %v162, 0.0
  %v167 = vsel %vm165, %v163, 0.0
  %v168 = vadd.f32 %v166, %v167
  %v169 = vsel %vm165, %v164, 0.0
  %v170 = vadd.f32 %v168, %v169
  %v171 = vrot.slane %v170, 4
  %v172 = vadd.f32 %v170, %v171
  %v173 = vrot.slane %v172, 2
  %v174 = vadd.f32 %v172, %v173
  %v175 = vrot.slane %v174, 1
  %v176 = vadd.f32 %v174, %v175
  %v177 = vstv %s41
  %v178 = vrcp.pop %v177
  %v179 = vmul.f32 %v176, %v178
  %v180 = vsub.f32 %v134, %v179
  %v181 = vsub.f32 %v139, %v179
  %v182 = vsub.f32 %v144, %v179
  %v183 = vmul.f32 %v180, %v180
  %v184 = vmul.f32 %v181, %v181
  %v185 = vmul.f32 %v182, %v182
  %v186 = vmul.f32 %v183, %v150
  %v187 = vmul.f32 %v184, %v155
  %v188 = vmul.f32 %v185, %v160
  %v189 = vsel %vm165, %v186, 0.0
  %v190 = vsel %vm165, %v187, 0.0
  %v191 = vadd.f32 %v189, %v190
  %v192 = vsel %vm165, %v188, 0.0
  %v193 = vadd.f32 %v191, %v192
  %v194 = vrot.slane %v193, 4
  %v195 = vadd.f32 %v193, %v194
  %v196 = vrot.slane %v195, 2
  %v197 = vadd.f32 %v195, %v196
  %v198 = vrot.slane %v197, 1
  %v199 = vadd.f32 %v197, %v198
  %v200 = vmul.f32 %v199, %v178
  %v201 = vadd.f32 %v200, 1e-05
  %v202 = vrsqrt.pop %v201
  %v203 = vmul.f32 %v180, %v202
  %v204 = vmul.f32 %v181, %v202
  %v205 = vmul.f32 %v182, %v202
  %v206 = vld [vmem:[%s4] sm:$0x1]
  %v208 = vlaneseq
  %v209 = vshrl.u32 %v208, 7
  %v210 = vsub.s32 0, %v209
  %v211 = vrot.slane %v206, %v210
  %v213 = vmul.f32 %v203, %v211
  %v214 = vmul.f32 %v204, %v211
  %v215 = vmul.f32 %v205, %v211
  %v216 = vld [vmem:[%s5] sm:$0x1]
  %v218 = vlaneseq
  %v219 = vshrl.u32 %v218, 7
  %v220 = vsub.s32 0, %v219
  %v221 = vrot.slane %v216, %v220
  %v223 = vadd.f32 %v213, %v221
  %v224 = vadd.f32 %v214, %v221
  %v225 = vadd.f32 %v215, %v221
  %v226 = vmax.f32 %v223, 0.0
  %v227 = vmax.f32 %v224, 0.0
  %v228 = vmax.f32 %v225, 0.0
  %229 = vst.msk [vmem:[%s6] sm:$0xff] %vm165, %v226
  %230 = vst.msk [vmem:[%s6 + $0x8] sm:$0xff] %vm165, %v227
  %231 = vst.msk [vmem:[%s6 + $0x10] sm:$0xff] %vm165, %v228
  // Predicated region
  $region26: #{smodel_forward.3} parent=0 // pred_check
    _
  $region27: #{smodel_forward.3} parent=0 // pred_check_branch
    %233 = sbr.rel (0) target = $region29
  $region28: #{smodel_forward.3} parent=0 // pred_region
    _
  $region29: #{smodel_forward.3} parent=0 // pred_fallthru
    _
  // Predicated region
  $region30: #{smodel_forward.3} parent=0 // pred_check
    _
  $region31: #{smodel_forward.3} parent=0 // pred_check_branch
    %235 = sbr.rel (0) target = $region33
  $region32: #{smodel_forward.3} parent=0 // pred_region
    _
  $region33: #{smodel_forward.3} parent=0 // pred_fallthru
    _

// kernel: smodel_forward.4
$region0: #{smodel_forward.4}
  #allocation0 [shape = 'u32[]', space=smem, size = 0x4, offset = 0x4, fixed_abs, tag = 'smem constant byte address 0x4 - core index']
  #allocation1 [shape = 'u32[144,128]{1,0:T(1,128)}', space=vmem, size = 0x12000, scoped, tag = 'internal scratch']
  %s0 = inlined_call_operand.vmem [shape: f32[24,128], index: 0, kind: input, shape index: {}]
  %s1 = inlined_call_operand.vmem [shape: f32[24,128], index: 1, kind: input, shape index: {}]
  %s2 = inlined_call_operand.vmem [shape: bf16[16,24], index: 2, kind: input, shape index: {}]
  %s3 = inlined_call_operand.vmem [shape: f32[1,128], index: 3, kind: input, shape index: {}]
  %s4 = inlined_call_operand.vmem [shape: bf16[128,128], index: 4, kind: input, shape index: {}]
  %s5 = inlined_call_operand.vmem [shape: f32[1,128], index: 5, kind: input, shape index: {}]
  %s6 = inlined_call_operand.vmem [shape: f32[1,128], index: 6, kind: input, shape index: {}]
  %s7 = inlined_call_operand.vmem [shape: f32[1,128], index: 7, kind: input, shape index: {}]
  %s8 = inlined_call_operand.vmem [shape: bf16[128,128], index: 8, kind: input, shape index: {}]
  %s9 = inlined_call_operand.vmem [shape: f32[1,128], index: 9, kind: input, shape index: {}]
  %s10 = inlined_call_operand.vmem [shape: f32[1,128], index: 10, kind: input, shape index: {}]
  %s11 = inlined_call_operand.vmem [shape: f32[1,128], index: 11, kind: input, shape index: {}]
  %s12 = inlined_call_operand.vmem [shape: bf16[128,128], index: 12, kind: input, shape index: {}]
  %s13 = inlined_call_operand.vmem [shape: f32[1,128], index: 13, kind: input, shape index: {}]
  %s14 = inlined_call_operand.vmem [shape: f32[1,128], index: 14, kind: input, shape index: {}]
  %s15 = inlined_call_operand.vmem [shape: f32[1,128], index: 15, kind: input, shape index: {}]
  %s16 = inlined_call_operand.vmem [shape: f32[16,32], index: 16, kind: output, shape index: {}]
  %s17 = sld [smem:[#allocation0]]
  $region74: #{smodel_forward.4} parent=0
    _
  %s19 = ssub.s32 1, %s17
  %s20 = scalar_select 0, %s19, %s17
  // Predicated region
  $region2: #{smodel_forward.4} parent=0 // pred_check
    _
  $region3: #{smodel_forward.4} parent=0 // pred_check_branch
    %22 = sbr.rel (0) target = $region5
  $region4: #{smodel_forward.4} parent=0 // pred_region
    _
  $region5: #{smodel_forward.4} parent=0 // pred_fallthru
    _
  // Predicated region
  $region6: #{smodel_forward.4} parent=0 // pred_check
    _
  $region7: #{smodel_forward.4} parent=0 // pred_check_branch
    %24 = sbr.rel (0) target = $region9
  $region8: #{smodel_forward.4} parent=0 // pred_region
    _
  $region9: #{smodel_forward.4} parent=0 // pred_fallthru
    _
  // Predicated region
  $region10: #{smodel_forward.4} parent=0 // pred_check
    _
  $region11: #{smodel_forward.4} parent=0 // pred_check_branch
    %26 = sbr.rel (0) target = $region13
  $region12: #{smodel_forward.4} parent=0 // pred_region
    _
  $region13: #{smodel_forward.4} parent=0 // pred_fallthru
    _
  // Predicated region
  $region14: #{smodel_forward.4} parent=0 // pred_check
    _
  $region15: #{smodel_forward.4} parent=0 // pred_check_branch
    %28 = sbr.rel (0) target = $region17
  $region16: #{smodel_forward.4} parent=0 // pred_region
    _
  $region17: #{smodel_forward.4} parent=0 // pred_fallthru
    _
  // Predicated region
  $region18: #{smodel_forward.4} parent=0 // pred_check
    _
  $region19: #{smodel_forward.4} parent=0 // pred_check_branch
    %30 = sbr.rel (0) target = $region21
  $region20: #{smodel_forward.4} parent=0 // pred_region
    _
  $region21: #{smodel_forward.4} parent=0 // pred_fallthru
    _
  // Predicated region
  $region22: #{smodel_forward.4} parent=0 // pred_check
    _
  $region23: #{smodel_forward.4} parent=0 // pred_check_branch
    %32 = sbr.rel (0) target = $region25
  $region24: #{smodel_forward.4} parent=0 // pred_region
    _
  $region25: #{smodel_forward.4} parent=0 // pred_fallthru
    _
  // Predicated region
  $region26: #{smodel_forward.4} parent=0 // pred_check
    _
  $region27: #{smodel_forward.4} parent=0 // pred_check_branch
    %34 = sbr.rel (0) target = $region29
  $region28: #{smodel_forward.4} parent=0 // pred_region
    _
  $region29: #{smodel_forward.4} parent=0 // pred_fallthru
    _
  // Predicated region
  $region30: #{smodel_forward.4} parent=0 // pred_check
    _
  $region31: #{smodel_forward.4} parent=0 // pred_check_branch
    %36 = sbr.rel (0) target = $region33
  $region32: #{smodel_forward.4} parent=0 // pred_region
    _
  $region33: #{smodel_forward.4} parent=0 // pred_fallthru
    _
  // Predicated region
  $region34: #{smodel_forward.4} parent=0 // pred_check
    _
  $region35: #{smodel_forward.4} parent=0 // pred_check_branch
    %38 = sbr.rel (0) target = $region37
  $region36: #{smodel_forward.4} parent=0 // pred_region
    _
  $region37: #{smodel_forward.4} parent=0 // pred_fallthru
    _
  // Predicated region
  $region38: #{smodel_forward.4} parent=0 // pred_check
    _
  $region39: #{smodel_forward.4} parent=0 // pred_check_branch
    %40 = sbr.rel (0) target = $region41
  $region40: #{smodel_forward.4} parent=0 // pred_region
    _
  $region41: #{smodel_forward.4} parent=0 // pred_fallthru
    _
  // Predicated region
  $region42: #{smodel_forward.4} parent=0 // pred_check
    _
  $region43: #{smodel_forward.4} parent=0 // pred_check_branch
    %42 = sbr.rel (0) target = $region45
  $region44: #{smodel_forward.4} parent=0 // pred_region
    _
  $region45: #{smodel_forward.4} parent=0 // pred_fallthru
    _
  // Predicated region
  $region46: #{smodel_forward.4} parent=0 // pred_check
    _
  $region47: #{smodel_forward.4} parent=0 // pred_check_branch
    %44 = sbr.rel (0) target = $region49
  $region48: #{smodel_forward.4} parent=0 // pred_region
    _
  $region49: #{smodel_forward.4} parent=0 // pred_fallthru
    _
  // Predicated region
  $region50: #{smodel_forward.4} parent=0 // pred_check
    _
  $region51: #{smodel_forward.4} parent=0 // pred_check_branch
    %46 = sbr.rel (0) target = $region53
  $region52: #{smodel_forward.4} parent=0 // pred_region
    _
  $region53: #{smodel_forward.4} parent=0 // pred_fallthru
    _
  // Predicated region
  $region54: #{smodel_forward.4} parent=0 // pred_check
    _
  $region55: #{smodel_forward.4} parent=0 // pred_check_branch
    %48 = sbr.rel (0) target = $region57
  $region56: #{smodel_forward.4} parent=0 // pred_region
    _
  $region57: #{smodel_forward.4} parent=0 // pred_fallthru
    _
  // Predicated region
  $region58: #{smodel_forward.4} parent=0 // pred_check
    _
  $region59: #{smodel_forward.4} parent=0 // pred_check_branch
    %50 = sbr.rel (0) target = $region61
  $region60: #{smodel_forward.4} parent=0 // pred_region
    _
  $region61: #{smodel_forward.4} parent=0 // pred_fallthru
    _
  // Predicated region
  $region62: #{smodel_forward.4} parent=0 // pred_check
    _
  $region63: #{smodel_forward.4} parent=0 // pred_check_branch
    %52 = sbr.rel (0) target = $region65
  $region64: #{smodel_forward.4} parent=0 // pred_region
    _
  $region65: #{smodel_forward.4} parent=0 // pred_fallthru
    _
  %v54 = vld [vmem:[%s1] sm:$0xff]
  %v55 = vld [vmem:[%s1 + $0x8] sm:$0xff]
  %v56 = vld [vmem:[%s1 + $0x10] sm:$0xff]
  %v57 = vadd.f32 %v54, %v55
  %v58 = vadd.f32 %v57, %v56
  %v59 = vrot.slane %v58, 4
  %v60 = vadd.f32 %v58, %v59
  %v61 = vrot.slane %v60, 2
  %v62 = vadd.f32 %v60, %v61
  %v63 = vrot.slane %v62, 1
  %v64 = vadd.f32 %v62, %v63
  %v65 = vmax.f32 %v64, 1.0
  %v66 = vld [vmem:[%s0] sm:$0xff]
  %v67 = vld [vmem:[%s0 + $0x8] sm:$0xff]
  %v68 = vld [vmem:[%s0 + $0x10] sm:$0xff]
  %v69 = vpack.c.bf16 %v67, %v66
  %v70 = vpack.c.bf16 %v68, %v68
  %v71 = vld [vmem:[%s4] sm:$0xf]
  %v72 = vld [vmem:[%s4 + $0x4] sm:$0xf]
  %v73 = vld [vmem:[%s4 + $0x8] sm:$0xf]
  %v74 = vld [vmem:[%s4 + $0xc] sm:$0xf]
  %v75 = vld [vmem:[%s4 + $0x10] sm:$0xf]
  %v76 = vld [vmem:[%s4 + $0x14] sm:$0xf]
  %v77 = vld [vmem:[%s4 + $0x18] sm:$0xf]
  %v78 = vld [vmem:[%s4 + $0x1c] sm:$0xf]
  %v79 = vld [vmem:[%s4 + $0x20] sm:$0xf]
  %v80 = vld [vmem:[%s4 + $0x24] sm:$0xf]
  %v81 = vld [vmem:[%s4 + $0x28] sm:$0xf]
  %v82 = vld [vmem:[%s4 + $0x2c] sm:$0xf]
  %v83 = vld [vmem:[%s4 + $0x30] sm:$0xf]
  %v84 = vld [vmem:[%s4 + $0x34] sm:$0xf]
  %v85 = vld [vmem:[%s4 + $0x38] sm:$0xf]
  %v86 = vld [vmem:[%s4 + $0x3c] sm:$0xf]
  %v87 = vld [vmem:[%s5] sm:$0x1]
  %v89 = vlaneseq
  %v90 = vshrl.u32 %v89, 7
  %v91 = vsub.s32 0, %v90
  %v92 = vrot.slane %v87, %v91
  %v110 = vunpack.c.l.b16 %v71
  %v111 = vunpack.c.l.b16 %v72
  %v112 = vunpack.c.l.b16 %v73
  %v113 = vunpack.c.l.b16 %v74
  %v114 = vunpack.c.l.b16 %v75
  %v115 = vunpack.c.l.b16 %v76
  %v116 = vunpack.c.l.b16 %v77
  %v117 = vunpack.c.l.b16 %v78
  %v118 = vunpack.c.l.b16 %v79
  %v119 = vunpack.c.l.b16 %v80
  %v120 = vunpack.c.l.b16 %v81
  %v121 = vunpack.c.l.b16 %v82
  %v122 = vunpack.c.l.b16 %v83
  %v123 = vunpack.c.l.b16 %v84
  %v124 = vunpack.c.l.b16 %v85
  %v125 = vunpack.c.l.b16 %v86
  %v126 = vpack.c.b16 %v111, %v110
  %v127 = vpack.c.b16 %v113, %v112
  %v128 = vpack.c.b16 %v115, %v114
  %v129 = vpack.c.b16 %v117, %v116
  %v130 = vpack.c.b16 %v119, %v118
  %v131 = vpack.c.b16 %v121, %v120
  %v132 = vpack.c.b16 %v123, %v122
  %v133 = vpack.c.b16 %v125, %v124
  %142 = vmatprep.subr.bf16.mxu0 0
  %143 = vmatpush1.bf16.msra.mxu0 %v126
  %144 = vmatprep.subr.bf16.mxu0 0
  %145 = vmatpush1.bf16.msra.mxu0 %v127
  %146 = vmatprep.subr.bf16.mxu0 0
  %147 = vmatpush1.bf16.msra.mxu0 %v128
  %148 = vmatprep.subr.bf16.mxu0 0
  %149 = vmatpush1.bf16.msra.mxu0 %v129
  %150 = vmatprep.subr.bf16.mxu0 0
  %151 = vmatpush1.bf16.msra.mxu0 %v130
  %152 = vmatprep.subr.bf16.mxu0 0
  %153 = vmatpush1.bf16.msra.mxu0 %v131
  %154 = vmatprep.subr.bf16.mxu0 0
  %155 = vmatpush1.bf16.msra.mxu0 %v132
  %156 = vmatprep.subr.bf16.mxu0 0
  %157 = vmatpush1.bf16.msra.mxu0 %v133
  %158 = vmatprep.subr.bf16.mxu0 0
  %159 = vmatpush1.bf16.msra.mxu0 0
  %160 = vmatprep.subr.bf16.mxu0 0
  %161 = vmatpush1.bf16.msra.mxu0 0
  %162 = vmatprep.subr.bf16.mxu0 0
  %163 = vmatpush1.bf16.msra.mxu0 0
  %164 = vmatprep.subr.bf16.mxu0 0
  %165 = vmatpush1.bf16.msra.mxu0 0
  %166 = vmatprep.subr.bf16.mxu0 0
  %167 = vmatpush1.bf16.msra.mxu0 0
  %168 = vmatprep.subr.bf16.mxu0 0
  %169 = vmatpush1.bf16.msra.mxu0 0
  %170 = vmatprep.subr.bf16.mxu0 0
  %171 = vmatpush1.bf16.msra.mxu0 0
  %172 = vmatprep.subr.bf16.mxu0 0
  %173 = vmatpush1.bf16.msra.mxu0 0
  %174 = vmatprep.mubr.bf16.mxu0 0
  %175 = vmatmul.mubr.bf16.gmra.mrb[0].mxu0 %v69
  %v176 = vpop.f32.mrb[0].mxu0
  %v177 = vadd.f32 %v92, %v176
  %v178 = vpop.f32.mrb[0].mxu0
  %v179 = vpop.f32.mrb[0].mxu0
  %v180 = vadd.f32 %v92, %v179
  %v181 = vpop.f32.mrb[0].mxu0
  %182 = vmatprep.mubr.bf16.mxu0 0
  %183 = vmatmul.mubr.bf16.gmra.mrb[0].mxu0 %v70
  %v184 = vpop.f32.mrb[0].mxu0
  %v185 = vadd.f32 %v92, %v184
  %v186 = vpop.f32.mrb[0].mxu0
  %v187 = vpop.f32.mrb[0].mxu0
  %v188 = vpop.f32.mrb[0].mxu0
  %189 = vdwg.mxu0
  %v190 = vmul.f32 %v177, %v54
  %v191 = vmul.f32 %v180, %v55
  %v192 = vmul.f32 %v185, %v56
  %v193 = vadd.f32 %v190, %v191
  %v194 = vadd.f32 %v193, %v192
  %v195 = vrot.slane %v194, 4
  %v196 = vadd.f32 %v194, %v195
  %v197 = vrot.slane %v196, 2
  %v198 = vadd.f32 %v196, %v197
  %v199 = vrot.slane %v198, 1
  %v200 = vadd.f32 %v198, %v199
  %v201 = vrcp.pop %v65
  %v202 = vmul.f32 %v200, %v201
  %v203 = vsub.f32 %v177, %v202
  %v204 = vsub.f32 %v180, %v202
  %v205 = vsub.f32 %v185, %v202
  %v206 = vmul.f32 %v203, %v203
  %v207 = vmul.f32 %v204, %v204
  %v208 = vmul.f32 %v205, %v205
  %v209 = vmul.f32 %v206, %v54
  %v210 = vmul.f32 %v207, %v55
  %v211 = vmul.f32 %v208, %v56
  %v212 = vadd.f32 %v209, %v210
  %v213 = vadd.f32 %v212, %v211
  %v214 = vrot.slane %v213, 4
  %v215 = vadd.f32 %v213, %v214
  %v216 = vrot.slane %v215, 2
  %v217 = vadd.f32 %v215, %v216
  %v218 = vrot.slane %v217, 1
  %v219 = vadd.f32 %v217, %v218
  %v220 = vmul.f32 %v219, %v201
  %v221 = vadd.f32 %v220, 1e-05
  %v222 = vrsqrt.pop %v221
  %v223 = vmul.f32 %v203, %v222
  %v224 = vmul.f32 %v204, %v222
  %v225 = vmul.f32 %v205, %v222
  %v226 = vld [vmem:[%s6] sm:$0x1]
  %v228 = vlaneseq
  %v229 = vshrl.u32 %v228, 7
  %v230 = vsub.s32 0, %v229
  %v231 = vrot.slane %v226, %v230
  %v233 = vmul.f32 %v223, %v231
  %v234 = vmul.f32 %v224, %v231
  %v235 = vmul.f32 %v225, %v231
  %v236 = vld [vmem:[%s7] sm:$0x1]
  %v238 = vlaneseq
  %v239 = vshrl.u32 %v238, 7
  %v240 = vsub.s32 0, %v239
  %v241 = vrot.slane %v236, %v240
  %v243 = vadd.f32 %v233, %v241
  %v244 = vadd.f32 %v234, %v241
  %v245 = vadd.f32 %v235, %v241
  %v246 = vmax.f32 %v243, 0.0
  %v247 = vmax.f32 %v244, 0.0
  %v248 = vmax.f32 %v245, 0.0
  %v249 = vpack.c.bf16 %v247, %v246
  %v250 = vpack.c.bf16 %v248, %v248
  %v251 = vld [vmem:[%s8] sm:$0xf]
  %v252 = vld [vmem:[%s8 + $0x4] sm:$0xf]
  %v253 = vld [vmem:[%s8 + $0x8] sm:$0xf]
  %v254 = vld [vmem:[%s8 + $0xc] sm:$0xf]
  %v255 = vld [vmem:[%s8 + $0x10] sm:$0xf]
  %v256 = vld [vmem:[%s8 + $0x14] sm:$0xf]
  %v257 = vld [vmem:[%s8 + $0x18] sm:$0xf]
  %v258 = vld [vmem:[%s8 + $0x1c] sm:$0xf]
  %v259 = vld [vmem:[%s8 + $0x20] sm:$0xf]
  %v260 = vld [vmem:[%s8 + $0x24] sm:$0xf]
  %v261 = vld [vmem:[%s8 + $0x28] sm:$0xf]
  %v262 = vld [vmem:[%s8 + $0x2c] sm:$0xf]
  %v263 = vld [vmem:[%s8 + $0x30] sm:$0xf]
  %v264 = vld [vmem:[%s8 + $0x34] sm:$0xf]
  %v265 = vld [vmem:[%s8 + $0x38] sm:$0xf]
  %v266 = vld [vmem:[%s8 + $0x3c] sm:$0xf]
  %v267 = vld [vmem:[%s9] sm:$0x1]
  %v269 = vlaneseq
  %v270 = vshrl.u32 %v269, 7
  %v271 = vsub.s32 0, %v270
  %v272 = vrot.slane %v267, %v271
  %v290 = vunpack.c.l.b16 %v251
  %v291 = vunpack.c.l.b16 %v252
  %v292 = vunpack.c.l.b16 %v253
  %v293 = vunpack.c.l.b16 %v254
  %v294 = vunpack.c.l.b16 %v255
  %v295 = vunpack.c.l.b16 %v256
  %v296 = vunpack.c.l.b16 %v257
  %v297 = vunpack.c.l.b16 %v258
  %v298 = vunpack.c.l.b16 %v259
  %v299 = vunpack.c.l.b16 %v260
  %v300 = vunpack.c.l.b16 %v261
  %v301 = vunpack.c.l.b16 %v262
  %v302 = vunpack.c.l.b16 %v263
  %v303 = vunpack.c.l.b16 %v264
  %v304 = vunpack.c.l.b16 %v265
  %v305 = vunpack.c.l.b16 %v266
  %v306 = vpack.c.b16 %v291, %v290
  %v307 = vpack.c.b16 %v293, %v292
  %v308 = vpack.c.b16 %v295, %v294
  %v309 = vpack.c.b16 %v297, %v296
  %v310 = vpack.c.b16 %v299, %v298
  %v311 = vpack.c.b16 %v301, %v300
  %v312 = vpack.c.b16 %v303, %v302
  %v313 = vpack.c.b16 %v305, %v304
  %322 = vmatprep.subr.bf16.mxu0 0
  %323 = vmatpush1.bf16.msra.mxu0 %v306
  %324 = vmatprep.subr.bf16.mxu0 0
  %325 = vmatpush1.bf16.msra.mxu0 %v307
  %326 = vmatprep.subr.bf16.mxu0 0
  %327 = vmatpush1.bf16.msra.mxu0 %v308
  %328 = vmatprep.subr.bf16.mxu0 0
  %329 = vmatpush1.bf16.msra.mxu0 %v309
  %330 = vmatprep.subr.bf16.mxu0 0
  %331 = vmatpush1.bf16.msra.mxu0 %v310
  %332 = vmatprep.subr.bf16.mxu0 0
  %333 = vmatpush1.bf16.msra.mxu0 %v311
  %334 = vmatprep.subr.bf16.mxu0 0
  %335 = vmatpush1.bf16.msra.mxu0 %v312
  %336 = vmatprep.subr.bf16.mxu0 0
  %337 = vmatpush1.bf16.msra.mxu0 %v313
  %338 = vmatprep.subr.bf16.mxu0 0
  %339 = vmatpush1.bf16.msra.mxu0 0
  %340 = vmatprep.subr.bf16.mxu0 0
  %341 = vmatpush1.bf16.msra.mxu0 0
  %342 = vmatprep.subr.bf16.mxu0 0
  %343 = vmatpush1.bf16.msra.mxu0 0
  %344 = vmatprep.subr.bf16.mxu0 0
  %345 = vmatpush1.bf16.msra.mxu0 0
  %346 = vmatprep.subr.bf16.mxu0 0
  %347 = vmatpush1.bf16.msra.mxu0 0
  %348 = vmatprep.subr.bf16.mxu0 0
  %349 = vmatpush1.bf16.msra.mxu0 0
  %350 = vmatprep.subr.bf16.mxu0 0
  %351 = vmatpush1.bf16.msra.mxu0 0
  %352 = vmatprep.subr.bf16.mxu0 0
  %353 = vmatpush1.bf16.msra.mxu0 0
  %354 = vmatprep.mubr.bf16.mxu0 0
  %355 = vmatmul.mubr.bf16.gmra.mrb[0].mxu0 %v249
  %v356 = vpop.f32.mrb[0].mxu0
  %v357 = vadd.f32 %v272, %v356
  %v358 = vpop.f32.mrb[0].mxu0
  %v359 = vpop.f32.mrb[0].mxu0
  %v360 = vadd.f32 %v272, %v359
  %v361 = vpop.f32.mrb[0].mxu0
  %362 = vmatprep.mubr.bf16.mxu0 0
  %363 = vmatmul.mubr.bf16.gmra.mrb[0].mxu0 %v250
  %v364 = vpop.f32.mrb[0].mxu0
  %v365 = vadd.f32 %v272, %v364
  %v366 = vpop.f32.mrb[0].mxu0
  %v367 = vpop.f32.mrb[0].mxu0
  %v368 = vpop.f32.mrb[0].mxu0
  %369 = vdwg.mxu0
  %v370 = vmul.f32 %v357, %v54
  %v371 = vmul.f32 %v360, %v55
  %v372 = vmul.f32 %v365, %v56
  %v373 = vadd.f32 %v370, %v371
  %v374 = vadd.f32 %v373, %v372
  %v375 = vrot.slane %v374, 4
  %v376 = vadd.f32 %v374, %v375
  %v377 = vrot.slane %v376, 2
  %v378 = vadd.f32 %v376, %v377
  %v379 = vrot.slane %v378, 1
  %v380 = vadd.f32 %v378, %v379
  %v381 = vmul.f32 %v380, %v201
  %v382 = vsub.f32 %v357, %v381
  %v383 = vsub.f32 %v360, %v381
  %v384 = vsub.f32 %v365, %v381
  %v385 = vmul.f32 %v382, %v382
  %v386 = vmul.f32 %v383, %v383
  %v387 = vmul.f32 %v384, %v384
  %v388 = vmul.f32 %v385, %v54
  %v389 = vmul.f32 %v386, %v55
  %v390 = vmul.f32 %v387, %v56
  %v391 = vadd.f32 %v388, %v389
  %v392 = vadd.f32 %v391, %v390
  %v393 = vrot.slane %v392, 4
  %v394 = vadd.f32 %v392, %v393
  %v395 = vrot.slane %v394, 2
  %v396 = vadd.f32 %v394, %v395
  %v397 = vrot.slane %v396, 1
  %v398 = vadd.f32 %v396, %v397
  %v399 = vmul.f32 %v398, %v201
  %v400 = vadd.f32 %v399, 1e-05
  %v401 = vrsqrt.pop %v400
  %v402 = vmul.f32 %v382, %v401
  %v403 = vmul.f32 %v383, %v401
  %v404 = vmul.f32 %v384, %v401
  %v405 = vld [vmem:[%s10] sm:$0x1]
  %v407 = vlaneseq
  %v408 = vshrl.u32 %v407, 7
  %v409 = vsub.s32 0, %v408
  %v410 = vrot.slane %v405, %v409
  %v412 = vmul.f32 %v402, %v410
  %v413 = vmul.f32 %v403, %v410
  %v414 = vmul.f32 %v404, %v410
  %v415 = vld [vmem:[%s11] sm:$0x1]
  %v417 = vlaneseq
  %v418 = vshrl.u32 %v417, 7
  %v419 = vsub.s32 0, %v418
  %v420 = vrot.slane %v415, %v419
  %v422 = vadd.f32 %v412, %v420
  %v423 = vadd.f32 %v413, %v420
  %v424 = vadd.f32 %v414, %v420
  %v425 = vmax.f32 %v422, 0.0
  %v426 = vmax.f32 %v423, 0.0
  %v427 = vmax.f32 %v424, 0.0
  %v428 = vpack.c.bf16 %v426, %v425
  %v429 = vpack.c.bf16 %v427, %v427
  %v430 = vld [vmem:[%s12] sm:$0xf]
  %v431 = vld [vmem:[%s12 + $0x4] sm:$0xf]
  %v432 = vld [vmem:[%s12 + $0x8] sm:$0xf]
  %v433 = vld [vmem:[%s12 + $0xc] sm:$0xf]
  %v434 = vld [vmem:[%s12 + $0x10] sm:$0xf]
  %v435 = vld [vmem:[%s12 + $0x14] sm:$0xf]
  %v436 = vld [vmem:[%s12 + $0x18] sm:$0xf]
  %v437 = vld [vmem:[%s12 + $0x1c] sm:$0xf]
  %v438 = vld [vmem:[%s12 + $0x20] sm:$0xf]
  %v439 = vld [vmem:[%s12 + $0x24] sm:$0xf]
  %v440 = vld [vmem:[%s12 + $0x28] sm:$0xf]
  %v441 = vld [vmem:[%s12 + $0x2c] sm:$0xf]
  %v442 = vld [vmem:[%s12 + $0x30] sm:$0xf]
  %v443 = vld [vmem:[%s12 + $0x34] sm:$0xf]
  %v444 = vld [vmem:[%s12 + $0x38] sm:$0xf]
  %v445 = vld [vmem:[%s12 + $0x3c] sm:$0xf]
  %v446 = vld [vmem:[%s13] sm:$0x1]
  %v448 = vlaneseq
  %v449 = vshrl.u32 %v448, 7
  %v450 = vsub.s32 0, %v449
  %v451 = vrot.slane %v446, %v450
  %v469 = vunpack.c.l.b16 %v430
  %v470 = vunpack.c.l.b16 %v431
  %v471 = vunpack.c.l.b16 %v432
  %v472 = vunpack.c.l.b16 %v433
  %v473 = vunpack.c.l.b16 %v434
  %v474 = vunpack.c.l.b16 %v435
  %v475 = vunpack.c.l.b16 %v436
  %v476 = vunpack.c.l.b16 %v437
  %v477 = vunpack.c.l.b16 %v438
  %v478 = vunpack.c.l.b16 %v439
  %v479 = vunpack.c.l.b16 %v440
  %v480 = vunpack.c.l.b16 %v441
  %v481 = vunpack.c.l.b16 %v442
  %v482 = vunpack.c.l.b16 %v443
  %v483 = vunpack.c.l.b16 %v444
  %v484 = vunpack.c.l.b16 %v445
  %v485 = vpack.c.b16 %v470, %v469
  %v486 = vpack.c.b16 %v472, %v471
  %v487 = vpack.c.b16 %v474, %v473
  %v488 = vpack.c.b16 %v476, %v475
  %v489 = vpack.c.b16 %v478, %v477
  %v490 = vpack.c.b16 %v480, %v479
  %v491 = vpack.c.b16 %v482, %v481
  %v492 = vpack.c.b16 %v484, %v483
  %501 = vmatprep.subr.bf16.mxu0 0
  %502 = vmatpush1.bf16.msra.mxu0 %v485
  %503 = vmatprep.subr.bf16.mxu0 0
  %504 = vmatpush1.bf16.msra.mxu0 %v486
  %505 = vmatprep.subr.bf16.mxu0 0
  %506 = vmatpush1.bf16.msra.mxu0 %v487
  %507 = vmatprep.subr.bf16.mxu0 0
  %508 = vmatpush1.bf16.msra.mxu0 %v488
  %509 = vmatprep.subr.bf16.mxu0 0
  %510 = vmatpush1.bf16.msra.mxu0 %v489
  %511 = vmatprep.subr.bf16.mxu0 0
  %512 = vmatpush1.bf16.msra.mxu0 %v490
  %513 = vmatprep.subr.bf16.mxu0 0
  %514 = vmatpush1.bf16.msra.mxu0 %v491
  %515 = vmatprep.subr.bf16.mxu0 0
  %516 = vmatpush1.bf16.msra.mxu0 %v492
  %517 = vmatprep.subr.bf16.mxu0 0
  %518 = vmatpush1.bf16.msra.mxu0 0
  %519 = vmatprep.subr.bf16.mxu0 0
  %520 = vmatpush1.bf16.msra.mxu0 0
  %521 = vmatprep.subr.bf16.mxu0 0
  %522 = vmatpush1.bf16.msra.mxu0 0
  %523 = vmatprep.subr.bf16.mxu0 0
  %524 = vmatpush1.bf16.msra.mxu0 0
  %525 = vmatprep.subr.bf16.mxu0 0
  %526 = vmatpush1.bf16.msra.mxu0 0
  %527 = vmatprep.subr.bf16.mxu0 0
  %528 = vmatpush1.bf16.msra.mxu0 0
  %529 = vmatprep.subr.bf16.mxu0 0
  %530 = vmatpush1.bf16.msra.mxu0 0
  %531 = vmatprep.subr.bf16.mxu0 0
  %532 = vmatpush1.bf16.msra.mxu0 0
  %533 = vmatprep.mubr.bf16.mxu0 0
  %534 = vmatmul.mubr.bf16.gmra.mrb[0].mxu0 %v428
  %v535 = vpop.f32.mrb[0].mxu0
  %v536 = vadd.f32 %v451, %v535
  %v537 = vpop.f32.mrb[0].mxu0
  %v538 = vpop.f32.mrb[0].mxu0
  %v539 = vadd.f32 %v451, %v538
  %v540 = vpop.f32.mrb[0].mxu0
  %541 = vmatprep.mubr.bf16.mxu0 0
  %542 = vmatmul.mubr.bf16.gmra.mrb[0].mxu0 %v429
  %v543 = vpop.f32.mrb[0].mxu0
  %v544 = vadd.f32 %v451, %v543
  %v545 = vpop.f32.mrb[0].mxu0
  %v546 = vpop.f32.mrb[0].mxu0
  %v547 = vpop.f32.mrb[0].mxu0
  %548 = vdwg.mxu0
  %v549 = vmul.f32 %v536, %v54
  %v550 = vmul.f32 %v539, %v55
  %v551 = vmul.f32 %v544, %v56
  %v552 = vadd.f32 %v549, %v550
  %v553 = vadd.f32 %v552, %v551
  %v554 = vrot.slane %v553, 4
  %v555 = vadd.f32 %v553, %v554
  %v556 = vrot.slane %v555, 2
  %v557 = vadd.f32 %v555, %v556
  %v558 = vrot.slane %v557, 1
  %v559 = vadd.f32 %v557, %v558
  %v560 = vmul.f32 %v559, %v201
  %v561 = vsub.f32 %v536, %v560
  %v562 = vsub.f32 %v539, %v560
  %v563 = vsub.f32 %v544, %v560
  %v564 = vmul.f32 %v561, %v561
  %v565 = vmul.f32 %v562, %v562
  %v566 = vmul.f32 %v563, %v563
  %v567 = vmul.f32 %v564, %v54
  %v568 = vmul.f32 %v565, %v55
  %v569 = vmul.f32 %v566, %v56
  %v570 = vadd.f32 %v567, %v568
  %v571 = vadd.f32 %v570, %v569
  %v572 = vrot.slane %v571, 4
  %v573 = vadd.f32 %v571, %v572
  %v574 = vrot.slane %v573, 2
  %v575 = vadd.f32 %v573, %v574
  %v576 = vrot.slane %v575, 1
  %v577 = vadd.f32 %v575, %v576
  %v578 = vmul.f32 %v577, %v201
  %v579 = vadd.f32 %v578, 1e-05
  %v580 = vrsqrt.pop %v579
  %v581 = vmul.f32 %v561, %v580
  %v582 = vmul.f32 %v562, %v580
  %v583 = vmul.f32 %v563, %v580
  %v584 = vld [vmem:[%s14] sm:$0x1]
  %v586 = vlaneseq
  %v587 = vshrl.u32 %v586, 7
  %v588 = vsub.s32 0, %v587
  %v589 = vrot.slane %v584, %v588
  %v591 = vmul.f32 %v581, %v589
  %v592 = vmul.f32 %v582, %v589
  %v593 = vmul.f32 %v583, %v589
  %v594 = vld [vmem:[%s15] sm:$0x1]
  %v596 = vlaneseq
  %v597 = vshrl.u32 %v596, 7
  %v598 = vsub.s32 0, %v597
  %v599 = vrot.slane %v594, %v598
  %v601 = vadd.f32 %v591, %v599
  %v602 = vadd.f32 %v592, %v599
  %v603 = vadd.f32 %v593, %v599
  %v604 = vmax.f32 %v601, 0.0
  %v605 = vmax.f32 %v602, 0.0
  %v606 = vmax.f32 %v603, 0.0
  %vm607 = vcmp.ge.f32.partialorder %v604, 0.0
  %vm608 = vcmp.ge.f32.partialorder %v605, 0.0
  %vm609 = vcmp.ge.f32.partialorder %v606, 0.0
  %v610 = vmul.f32 %v604, 0.01
  %v611 = vmul.f32 %v605, 0.01
  %v612 = vmul.f32 %v606, 0.01
  %v613 = vsel %vm607, %v604, %v610
  %v614 = vsel %vm608, %v605, %v611
  %v615 = vsel %vm609, %v606, %v612
  %vm616 = vcmp.gt.f32.partialorder %v54, 0.0
  %vm617 = vcmp.gt.f32.partialorder %v55, 0.0
  %vm618 = vcmp.gt.f32.partialorder %v56, 0.0
  %v619 = vld [vmem:[%s3] sm:$0x1]
  %v621 = vlaneseq
  %v622 = vshrl.u32 %v621, 7
  %v623 = vsub.s32 0, %v622
  %v624 = vrot.slane %v619, %v623
  %v626 = vmul.f32 %v613, %v624
  %v627 = vmul.f32 %v614, %v624
  %v628 = vmul.f32 %v615, %v624
  %v629 = vsel %vm616, %v626, 0.0
  %v630 = vsel %vm617, %v627, 0.0
  %v631 = vsel %vm618, %v628, 0.0
  %635 = vrot.lane.b32.xlu0 %v629, 96
  %v636 = vpop.permute.xlu0 %635
  %637 = vrot.lane.b32.xlu0 %v630, 96
  %v638 = vpop.permute.xlu0 %637
  %639 = vrot.lane.b32.xlu0 %v631, 96
  %v640 = vpop.permute.xlu0 %639
  %v644 = vadd.f32 %v629, %v636
  %v645 = vadd.f32 %v630, %v638
  %v646 = vadd.f32 %v631, %v640
  %647 = vrot.lane.b32.xlu0 %v629, 64
  %v648 = vpop.permute.xlu0 %647
  %649 = vrot.lane.b32.xlu0 %v630, 64
  %v650 = vpop.permute.xlu0 %649
  %651 = vrot.lane.b32.xlu0 %v631, 64
  %v652 = vpop.permute.xlu0 %651
  %v656 = vadd.f32 %v644, %v648
  %v657 = vadd.f32 %v645, %v650
  %v658 = vadd.f32 %v646, %v652
  %659 = vrot.lane.b32.xlu0 %v629, 32
  %v660 = vpop.permute.xlu0 %659
  %661 = vrot.lane.b32.xlu0 %v630, 32
  %v662 = vpop.permute.xlu0 %661
  %663 = vrot.lane.b32.xlu0 %v631, 32
  %v664 = vpop.permute.xlu0 %663
  %v668 = vadd.f32 %v656, %v660
  %v669 = vadd.f32 %v657, %v662
  %v670 = vadd.f32 %v658, %v664
  %v671 = vld [vmem:[%s2] sm:$0xf]
  %v672 = vld [vmem:[%s2 + $0x4] sm:$0xf]
  %v673 = vpack.c.bf16 %v669, %v668
  %v674 = vpack.c.bf16 %v670, %v670
  %v677 = vunpack.c.l.b16 %v671
  %v678 = vunpack.c.l.b16 %v672
  %v679 = vpack.c.b16 %v678, %v677
  %vm680 = vcmask 195584
  %v682 = vsel %vm680, %v679, 0
  %vm684 = vcmask 1043456
  %v686 = vsel %vm684, %v674, 0
  %688 = vmatprep.subr.bf16.mxu0 0
  %689 = vmatpush1.bf16.msra.mxu0 %v673
  %690 = vmatprep.subr.bf16.mxu0 0
  %691 = vmatpush1.bf16.msra.mxu0 %v686
  %692 = vmatprep.subr.bf16.mxu0 0
  %693 = vmatpush1.bf16.msra.mxu0 0
  %694 = vmatprep.subr.bf16.mxu0 0
  %695 = vmatpush1.bf16.msra.mxu0 0
  %696 = vmatprep.subr.bf16.mxu0 0
  %697 = vmatpush1.bf16.msra.mxu0 0
  %698 = vmatprep.subr.bf16.mxu0 0
  %699 = vmatpush1.bf16.msra.mxu0 0
  %700 = vmatprep.subr.bf16.mxu0 0
  %701 = vmatpush1.bf16.msra.mxu0 0
  %702 = vmatprep.subr.bf16.mxu0 0
  %703 = vmatpush1.bf16.msra.mxu0 0
  %704 = vmatprep.subr.bf16.mxu0 0
  %705 = vmatpush1.bf16.msra.mxu0 0
  %706 = vmatprep.subr.bf16.mxu0 0
  %707 = vmatpush1.bf16.msra.mxu0 0
  %708 = vmatprep.subr.bf16.mxu0 0
  %709 = vmatpush1.bf16.msra.mxu0 0
  %710 = vmatprep.subr.bf16.mxu0 0
  %711 = vmatpush1.bf16.msra.mxu0 0
  %712 = vmatprep.subr.bf16.mxu0 0
  %713 = vmatpush1.bf16.msra.mxu0 0
  %714 = vmatprep.subr.bf16.mxu0 0
  %715 = vmatpush1.bf16.msra.mxu0 0
  %716 = vmatprep.subr.bf16.mxu0 0
  %717 = vmatpush1.bf16.msra.mxu0 0
  %718 = vmatprep.subr.bf16.mxu0 0
  %719 = vmatpush1.bf16.msra.mxu0 0
  %720 = vmatprep.mubr.bf16.mxu0 0
  %721 = vmatmul.mubr.bf16.gmra.mrb[0].mxu0 %v682
  %v722 = vpop.f32.mrb[0].mxu0
  %v723 = vadd.f32 0.0, %v722
  %v724 = vpop.f32.mrb[0].mxu0
  %v725 = vpop.f32.mrb[0].mxu0
  %v726 = vadd.f32 0.0, %v725
  %v727 = vpop.f32.mrb[0].mxu0
  %728 = vdwg.mxu0
  %vm729 = vcmask 261120
  %730 = vst.msk [vmem:[%s16] sm:$0xff] %vm729, %v723
  %731 = vst.msk [vmem:[%s16 + $0x8] sm:$0xff] %vm729, %v726
  // Predicated region
  $region66: #{smodel_forward.4} parent=0 // pred_check
    _
  $region67: #{smodel_forward.4} parent=0 // pred_check_branch
    %733 = sbr.rel (0) target = $region69
  $region68: #{smodel_forward.4} parent=0 // pred_region
    _
  $region69: #{smodel_forward.4} parent=0 // pred_fallthru
    _
  // Predicated region
  $region70: #{smodel_forward.4} parent=0 // pred_check
    _
  $region71: #{smodel_forward.4} parent=0 // pred_check_branch
    %735 = sbr.rel (0) target = $region73
  $region72: #{smodel_forward.4} parent=0 // pred_region
    _
  $region73: #{smodel_forward.4} parent=0 // pred_fallthru
    _

// kernel: smodel_forward.5
$region0: #{smodel_forward.5}
  #allocation0 [shape = 'u32[]', space=smem, size = 0x4, offset = 0x4, fixed_abs, tag = 'smem constant byte address 0x4 - core index']
  #allocation1 [shape = 'u32[144,128]{1,0:T(1,128)}', space=vmem, size = 0x12000, scoped, tag = 'internal scratch']
  %s0 = inlined_call_operand.vmem [shape: f32[24,128], index: 0, kind: input, shape index: {}]
  %s1 = inlined_call_operand.vmem [shape: f32[24,128], index: 1, kind: input, shape index: {}]
  %s2 = inlined_call_operand.vmem [shape: bf16[16,24], index: 2, kind: input, shape index: {}]
  %s3 = inlined_call_operand.vmem [shape: f32[1,128], index: 3, kind: input, shape index: {}]
  %s4 = inlined_call_operand.vmem [shape: bf16[128,128], index: 4, kind: input, shape index: {}]
  %s5 = inlined_call_operand.vmem [shape: f32[1,128], index: 5, kind: input, shape index: {}]
  %s6 = inlined_call_operand.vmem [shape: f32[1,128], index: 6, kind: input, shape index: {}]
  %s7 = inlined_call_operand.vmem [shape: f32[1,128], index: 7, kind: input, shape index: {}]
  %s8 = inlined_call_operand.vmem [shape: bf16[128,128], index: 8, kind: input, shape index: {}]
  %s9 = inlined_call_operand.vmem [shape: f32[1,128], index: 9, kind: input, shape index: {}]
  %s10 = inlined_call_operand.vmem [shape: f32[1,128], index: 10, kind: input, shape index: {}]
  %s11 = inlined_call_operand.vmem [shape: f32[1,128], index: 11, kind: input, shape index: {}]
  %s12 = inlined_call_operand.vmem [shape: bf16[128,128], index: 12, kind: input, shape index: {}]
  %s13 = inlined_call_operand.vmem [shape: f32[1,128], index: 13, kind: input, shape index: {}]
  %s14 = inlined_call_operand.vmem [shape: f32[1,128], index: 14, kind: input, shape index: {}]
  %s15 = inlined_call_operand.vmem [shape: f32[1,128], index: 15, kind: input, shape index: {}]
  %s16 = inlined_call_operand.hbm [shape: f32[16,32], index: 16, kind: output, shape index: {}]
  %s17 = sld [smem:[#allocation0]]
  $region74: #{smodel_forward.5} parent=0
    _
  %s19 = ssub.s32 1, %s17
  %s20 = scalar_select 0, %s19, %s17
  $region1: #{smodel_forward.5} parent=0
    #allocation2 [shape = 'u8[8192]{0}', space=vmem, size = 0x2000, scoped, tag = 'output window, operand 0, single buffered']
    #allocation3 [shape = 's32[1]{0}', space=sflag, size = 0x4, scoped, tag = 'scoped memory for smodel_forward.5']
    %21 = vsyncpa [#allocation3], 0
    // Predicated region
    $region2: #{smodel_forward.5} parent=1 // pred_check
      _
    $region3: #{smodel_forward.5} parent=1 // pred_check_branch
      %23 = sbr.rel (0) target = $region5
    $region4: #{smodel_forward.5} parent=1 // pred_region
      _
    $region5: #{smodel_forward.5} parent=1 // pred_fallthru
      _
    // Predicated region
    $region6: #{smodel_forward.5} parent=1 // pred_check
      _
    $region7: #{smodel_forward.5} parent=1 // pred_check_branch
      %25 = sbr.rel (0) target = $region9
    $region8: #{smodel_forward.5} parent=1 // pred_region
      _
    $region9: #{smodel_forward.5} parent=1 // pred_fallthru
      _
    // Predicated region
    $region10: #{smodel_forward.5} parent=1 // pred_check
      _
    $region11: #{smodel_forward.5} parent=1 // pred_check_branch
      %27 = sbr.rel (0) target = $region13
    $region12: #{smodel_forward.5} parent=1 // pred_region
      _
    $region13: #{smodel_forward.5} parent=1 // pred_fallthru
      _
    // Predicated region
    $region14: #{smodel_forward.5} parent=1 // pred_check
      _
    $region15: #{smodel_forward.5} parent=1 // pred_check_branch
      %29 = sbr.rel (0) target = $region17
    $region16: #{smodel_forward.5} parent=1 // pred_region
      _
    $region17: #{smodel_forward.5} parent=1 // pred_fallthru
      _
    // Predicated region
    $region18: #{smodel_forward.5} parent=1 // pred_check
      _
    $region19: #{smodel_forward.5} parent=1 // pred_check_branch
      %31 = sbr.rel (0) target = $region21
    $region20: #{smodel_forward.5} parent=1 // pred_region
      _
    $region21: #{smodel_forward.5} parent=1 // pred_fallthru
      _
    // Predicated region
    $region22: #{smodel_forward.5} parent=1 // pred_check
      _
    $region23: #{smodel_forward.5} parent=1 // pred_check_branch
      %33 = sbr.rel (0) target = $region25
    $region24: #{smodel_forward.5} parent=1 // pred_region
      _
    $region25: #{smodel_forward.5} parent=1 // pred_fallthru
      _
    // Predicated region
    $region26: #{smodel_forward.5} parent=1 // pred_check
      _
    $region27: #{smodel_forward.5} parent=1 // pred_check_branch
      %35 = sbr.rel (0) target = $region29
    $region28: #{smodel_forward.5} parent=1 // pred_region
      _
    $region29: #{smodel_forward.5} parent=1 // pred_fallthru
      _
    // Predicated region
    $region30: #{smodel_forward.5} parent=1 // pred_check
      _
    $region31: #{smodel_forward.5} parent=1 // pred_check_branch
      %37 = sbr.rel (0) target = $region33
    $region32: #{smodel_forward.5} parent=1 // pred_region
      _
    $region33: #{smodel_forward.5} parent=1 // pred_fallthru
      _
    // Predicated region
    $region34: #{smodel_forward.5} parent=1 // pred_check
      _
    $region35: #{smodel_forward.5} parent=1 // pred_check_branch
      %39 = sbr.rel (0) target = $region37
    $region36: #{smodel_forward.5} parent=1 // pred_region
      _
    $region37: #{smodel_forward.5} parent=1 // pred_fallthru
      _
    // Predicated region
    $region38: #{smodel_forward.5} parent=1 // pred_check
      _
    $region39: #{smodel_forward.5} parent=1 // pred_check_branch
      %41 = sbr.rel (0) target = $region41
    $region40: #{smodel_forward.5} parent=1 // pred_region
      _
    $region41: #{smodel_forward.5} parent=1 // pred_fallthru
      _
    // Predicated region
    $region42: #{smodel_forward.5} parent=1 // pred_check
      _
    $region43: #{smodel_forward.5} parent=1 // pred_check_branch
      %43 = sbr.rel (0) target = $region45
    $region44: #{smodel_forward.5} parent=1 // pred_region
      _
    $region45: #{smodel_forward.5} parent=1 // pred_fallthru
      _
    // Predicated region
    $region46: #{smodel_forward.5} parent=1 // pred_check
      _
    $region47: #{smodel_forward.5} parent=1 // pred_check_branch
      %45 = sbr.rel (0) target = $region49
    $region48: #{smodel_forward.5} parent=1 // pred_region
      _
    $region49: #{smodel_forward.5} parent=1 // pred_fallthru
      _
    // Predicated region
    $region50: #{smodel_forward.5} parent=1 // pred_check
      _
    $region51: #{smodel_forward.5} parent=1 // pred_check_branch
      %47 = sbr.rel (0) target = $region53
    $region52: #{smodel_forward.5} parent=1 // pred_region
      _
    $region53: #{smodel_forward.5} parent=1 // pred_fallthru
      _
    // Predicated region
    $region54: #{smodel_forward.5} parent=1 // pred_check
      _
    $region55: #{smodel_forward.5} parent=1 // pred_check_branch
      %49 = sbr.rel (0) target = $region57
    $region56: #{smodel_forward.5} parent=1 // pred_region
      _
    $region57: #{smodel_forward.5} parent=1 // pred_fallthru
      _
    // Predicated region
    $region58: #{smodel_forward.5} parent=1 // pred_check
      _
    $region59: #{smodel_forward.5} parent=1 // pred_check_branch
      %51 = sbr.rel (0) target = $region61
    $region60: #{smodel_forward.5} parent=1 // pred_region
      _
    $region61: #{smodel_forward.5} parent=1 // pred_fallthru
      _
    // Predicated region
    $region62: #{smodel_forward.5} parent=1 // pred_check
      _
    $region63: #{smodel_forward.5} parent=1 // pred_check_branch
      %53 = sbr.rel (0) target = $region65
    $region64: #{smodel_forward.5} parent=1 // pred_region
      _
    $region65: #{smodel_forward.5} parent=1 // pred_fallthru
      _
    %v55 = vld [vmem:[%s1] sm:$0xff]
    %v56 = vld [vmem:[%s1 + $0x8] sm:$0xff]
    %v57 = vld [vmem:[%s1 + $0x10] sm:$0xff]
    %v58 = vadd.f32 %v55, %v56
    %v59 = vadd.f32 %v58, %v57
    %v60 = vrot.slane %v59, 4
    %v61 = vadd.f32 %v59, %v60
    %v62 = vrot.slane %v61, 2
    %v63 = vadd.f32 %v61, %v62
    %v64 = vrot.slane %v63, 1
    %v65 = vadd.f32 %v63, %v64
    %v66 = vmax.f32 %v65, 1.0
    %v67 = vld [vmem:[%s0] sm:$0xff]
    %v68 = vld [vmem:[%s0 + $0x8] sm:$0xff]
    %v69 = vld [vmem:[%s0 + $0x10] sm:$0xff]
    %v70 = vpack.c.bf16 %v68, %v67
    %v71 = vpack.c.bf16 %v69, %v69
    %v72 = vld [vmem:[%s4] sm:$0xf]
    %v73 = vld [vmem:[%s4 + $0x4] sm:$0xf]
    %v74 = vld [vmem:[%s4 + $0x8] sm:$0xf]
    %v75 = vld [vmem:[%s4 + $0xc] sm:$0xf]
    %v76 = vld [vmem:[%s4 + $0x10] sm:$0xf]
    %v77 = vld [vmem:[%s4 + $0x14] sm:$0xf]
    %v78 = vld [vmem:[%s4 + $0x18] sm:$0xf]
    %v79 = vld [vmem:[%s4 + $0x1c] sm:$0xf]
    %v80 = vld [vmem:[%s4 + $0x20] sm:$0xf]
    %v81 = vld [vmem:[%s4 + $0x24] sm:$0xf]
    %v82 = vld [vmem:[%s4 + $0x28] sm:$0xf]
    %v83 = vld [vmem:[%s4 + $0x2c] sm:$0xf]
    %v84 = vld [vmem:[%s4 + $0x30] sm:$0xf]
    %v85 = vld [vmem:[%s4 + $0x34] sm:$0xf]
    %v86 = vld [vmem:[%s4 + $0x38] sm:$0xf]
    %v87 = vld [vmem:[%s4 + $0x3c] sm:$0xf]
    %v88 = vld [vmem:[%s5] sm:$0x1]
    %v90 = vlaneseq
    %v91 = vshrl.u32 %v90, 7
    %v92 = vsub.s32 0, %v91
    %v93 = vrot.slane %v88, %v92
    %v111 = vunpack.c.l.b16 %v72
    %v112 = vunpack.c.l.b16 %v73
    %v113 = vunpack.c.l.b16 %v74
    %v114 = vunpack.c.l.b16 %v75
    %v115 = vunpack.c.l.b16 %v76
    %v116 = vunpack.c.l.b16 %v77
    %v117 = vunpack.c.l.b16 %v78
    %v118 = vunpack.c.l.b16 %v79
    %v119 = vunpack.c.l.b16 %v80
    %v120 = vunpack.c.l.b16 %v81
    %v121 = vunpack.c.l.b16 %v82
    %v122 = vunpack.c.l.b16 %v83
    %v123 = vunpack.c.l.b16 %v84
    %v124 = vunpack.c.l.b16 %v85
    %v125 = vunpack.c.l.b16 %v86
    %v126 = vunpack.c.l.b16 %v87
    %v127 = vpack.c.b16 %v112, %v111
    %v128 = vpack.c.b16 %v114, %v113
    %v129 = vpack.c.b16 %v116, %v115
    %v130 = vpack.c.b16 %v118, %v117
    %v131 = vpack.c.b16 %v120, %v119
    %v132 = vpack.c.b16 %v122, %v121
    %v133 = vpack.c.b16 %v124, %v123
    %v134 = vpack.c.b16 %v126, %v125
    %143 = vmatprep.subr.bf16.mxu0 0
    %144 = vmatpush1.bf16.msra.mxu0 %v127
    %145 = vmatprep.subr.bf16.mxu0 0
    %146 = vmatpush1.bf16.msra.mxu0 %v128
    %147 = vmatprep.subr.bf16.mxu0 0
    %148 = vmatpush1.bf16.msra.mxu0 %v129
    %149 = vmatprep.subr.bf16.mxu0 0
    %150 = vmatpush1.bf16.msra.mxu0 %v130
    %151 = vmatprep.subr.bf16.mxu0 0
    %152 = vmatpush1.bf16.msra.mxu0 %v131
    %153 = vmatprep.subr.bf16.mxu0 0
    %154 = vmatpush1.bf16.msra.mxu0 %v132
    %155 = vmatprep.subr.bf16.mxu0 0
    %156 = vmatpush1.bf16.msra.mxu0 %v133
    %157 = vmatprep.subr.bf16.mxu0 0
    %158 = vmatpush1.bf16.msra.mxu0 %v134
    %159 = vmatprep.subr.bf16.mxu0 0
    %160 = vmatpush1.bf16.msra.mxu0 0
    %161 = vmatprep.subr.bf16.mxu0 0
    %162 = vmatpush1.bf16.msra.mxu0 0
    %163 = vmatprep.subr.bf16.mxu0 0
    %164 = vmatpush1.bf16.msra.mxu0 0
    %165 = vmatprep.subr.bf16.mxu0 0
    %166 = vmatpush1.bf16.msra.mxu0 0
    %167 = vmatprep.subr.bf16.mxu0 0
    %168 = vmatpush1.bf16.msra.mxu0 0
    %169 = vmatprep.subr.bf16.mxu0 0
    %170 = vmatpush1.bf16.msra.mxu0 0
    %171 = vmatprep.subr.bf16.mxu0 0
    %172 = vmatpush1.bf16.msra.mxu0 0
    %173 = vmatprep.subr.bf16.mxu0 0
    %174 = vmatpush1.bf16.msra.mxu0 0
    %175 = vmatprep.mubr.bf16.mxu0 0
    %176 = vmatmul.mubr.bf16.gmra.mrb[0].mxu0 %v70
    %v177 = vpop.f32.mrb[0].mxu0
    %v178 = vadd.f32 %v93, %v177
    %v179 = vpop.f32.mrb[0].mxu0
    %v180 = vpop.f32.mrb[0].mxu0
    %v181 = vadd.f32 %v93, %v180
    %v182 = vpop.f32.mrb[0].mxu0
    %183 = vmatprep.mubr.bf16.mxu0 0
    %184 = vmatmul.mubr.bf16.gmra.mrb[0].mxu0 %v71
    %v185 = vpop.f32.mrb[0].mxu0
    %v186 = vadd.f32 %v93, %v185
    %v187 = vpop.f32.mrb[0].mxu0
    %v188 = vpop.f32.mrb[0].mxu0
    %v189 = vpop.f32.mrb[0].mxu0
    %190 = vdwg.mxu0
    %v191 = vmul.f32 %v178, %v55
    %v192 = vmul.f32 %v181, %v56
    %v193 = vmul.f32 %v186, %v57
    %v194 = vadd.f32 %v191, %v192
    %v195 = vadd.f32 %v194, %v193
    %v196 = vrot.slane %v195, 4
    %v197 = vadd.f32 %v195, %v196
    %v198 = vrot.slane %v197, 2
    %v199 = vadd.f32 %v197, %v198
    %v200 = vrot.slane %v199, 1
    %v201 = vadd.f32 %v199, %v200
    %v202 = vrcp.pop %v66
    %v203 = vmul.f32 %v201, %v202
    %v204 = vsub.f32 %v178, %v203
    %v205 = vsub.f32 %v181, %v203
    %v206 = vsub.f32 %v186, %v203
    %v207 = vmul.f32 %v204, %v204
    %v208 = vmul.f32 %v205, %v205
    %v209 = vmul.f32 %v206, %v206
    %v210 = vmul.f32 %v207, %v55
    %v211 = vmul.f32 %v208, %v56
    %v212 = vmul.f32 %v209, %v57
    %v213 = vadd.f32 %v210, %v211
    %v214 = vadd.f32 %v213, %v212
    %v215 = vrot.slane %v214, 4
    %v216 = vadd.f32 %v214, %v215
    %v217 = vrot.slane %v216, 2
    %v218 = vadd.f32 %v216, %v217
    %v219 = vrot.slane %v218, 1
    %v220 = vadd.f32 %v218, %v219
    %v221 = vmul.f32 %v220, %v202
    %v222 = vadd.f32 %v221, 1e-05
    %v223 = vrsqrt.pop %v222
    %v224 = vmul.f32 %v204, %v223
    %v225 = vmul.f32 %v205, %v223
    %v226 = vmul.f32 %v206, %v223
    %v227 = vld [vmem:[%s6] sm:$0x1]
    %v229 = vlaneseq
    %v230 = vshrl.u32 %v229, 7
    %v231 = vsub.s32 0, %v230
    %v232 = vrot.slane %v227, %v231
    %v234 = vmul.f32 %v224, %v232
    %v235 = vmul.f32 %v225, %v232
    %v236 = vmul.f32 %v226, %v232
    %v237 = vld [vmem:[%s7] sm:$0x1]
    %v239 = vlaneseq
    %v240 = vshrl.u32 %v239, 7
    %v241 = vsub.s32 0, %v240
    %v242 = vrot.slane %v237, %v241
    %v244 = vadd.f32 %v234, %v242
    %v245 = vadd.f32 %v235, %v242
    %v246 = vadd.f32 %v236, %v242
    %v247 = vmax.f32 %v244, 0.0
    %v248 = vmax.f32 %v245, 0.0
    %v249 = vmax.f32 %v246, 0.0
    %v250 = vpack.c.bf16 %v248, %v247
    %v251 = vpack.c.bf16 %v249, %v249
    %v252 = vld [vmem:[%s8] sm:$0xf]
    %v253 = vld [vmem:[%s8 + $0x4] sm:$0xf]
    %v254 = vld [vmem:[%s8 + $0x8] sm:$0xf]
    %v255 = vld [vmem:[%s8 + $0xc] sm:$0xf]
    %v256 = vld [vmem:[%s8 + $0x10] sm:$0xf]
    %v257 = vld [vmem:[%s8 + $0x14] sm:$0xf]
    %v258 = vld [vmem:[%s8 + $0x18] sm:$0xf]
    %v259 = vld [vmem:[%s8 + $0x1c] sm:$0xf]
    %v260 = vld [vmem:[%s8 + $0x20] sm:$0xf]
    %v261 = vld [vmem:[%s8 + $0x24] sm:$0xf]
    %v262 = vld [vmem:[%s8 + $0x28] sm:$0xf]
    %v263 = vld [vmem:[%s8 + $0x2c] sm:$0xf]
    %v264 = vld [vmem:[%s8 + $0x30] sm:$0xf]
    %v265 = vld [vmem:[%s8 + $0x34] sm:$0xf]
    %v266 = vld [vmem:[%s8 + $0x38] sm:$0xf]
    %v267 = vld [vmem:[%s8 + $0x3c] sm:$0xf]
    %v268 = vld [vmem:[%s9] sm:$0x1]
    %v270 = vlaneseq
    %v271 = vshrl.u32 %v270, 7
    %v272 = vsub.s32 0, %v271
    %v273 = vrot.slane %v268, %v272
    %v291 = vunpack.c.l.b16 %v252
    %v292 = vunpack.c.l.b16 %v253
    %v293 = vunpack.c.l.b16 %v254
    %v294 = vunpack.c.l.b16 %v255
    %v295 = vunpack.c.l.b16 %v256
    %v296 = vunpack.c.l.b16 %v257
    %v297 = vunpack.c.l.b16 %v258
    %v298 = vunpack.c.l.b16 %v259
    %v299 = vunpack.c.l.b16 %v260
    %v300 = vunpack.c.l.b16 %v261
    %v301 = vunpack.c.l.b16 %v262
    %v302 = vunpack.c.l.b16 %v263
    %v303 = vunpack.c.l.b16 %v264
    %v304 = vunpack.c.l.b16 %v265
    %v305 = vunpack.c.l.b16 %v266
    %v306 = vunpack.c.l.b16 %v267
    %v307 = vpack.c.b16 %v292, %v291
    %v308 = vpack.c.b16 %v294, %v293
    %v309 = vpack.c.b16 %v296, %v295
    %v310 = vpack.c.b16 %v298, %v297
    %v311 = vpack.c.b16 %v300, %v299
    %v312 = vpack.c.b16 %v302, %v301
    %v313 = vpack.c.b16 %v304, %v303
    %v314 = vpack.c.b16 %v306, %v305
    %323 = vmatprep.subr.bf16.mxu0 0
    %324 = vmatpush1.bf16.msra.mxu0 %v307
    %325 = vmatprep.subr.bf16.mxu0 0
    %326 = vmatpush1.bf16.msra.mxu0 %v308
    %327 = vmatprep.subr.bf16.mxu0 0
    %328 = vmatpush1.bf16.msra.mxu0 %v309
    %329 = vmatprep.subr.bf16.mxu0 0
    %330 = vmatpush1.bf16.msra.mxu0 %v310
    %331 = vmatprep.subr.bf16.mxu0 0
    %332 = vmatpush1.bf16.msra.mxu0 %v311
    %333 = vmatprep.subr.bf16.mxu0 0
    %334 = vmatpush1.bf16.msra.mxu0 %v312
    %335 = vmatprep.subr.bf16.mxu0 0
    %336 = vmatpush1.bf16.msra.mxu0 %v313
    %337 = vmatprep.subr.bf16.mxu0 0
    %338 = vmatpush1.bf16.msra.mxu0 %v314
    %339 = vmatprep.subr.bf16.mxu0 0
    %340 = vmatpush1.bf16.msra.mxu0 0
    %341 = vmatprep.subr.bf16.mxu0 0
    %342 = vmatpush1.bf16.msra.mxu0 0
    %343 = vmatprep.subr.bf16.mxu0 0
    %344 = vmatpush1.bf16.msra.mxu0 0
    %345 = vmatprep.subr.bf16.mxu0 0
    %346 = vmatpush1.bf16.msra.mxu0 0
    %347 = vmatprep.subr.bf16.mxu0 0
    %348 = vmatpush1.bf16.msra.mxu0 0
    %349 = vmatprep.subr.bf16.mxu0 0
    %350 = vmatpush1.bf16.msra.mxu0 0
    %351 = vmatprep.subr.bf16.mxu0 0
    %352 = vmatpush1.bf16.msra.mxu0 0
    %353 = vmatprep.subr.bf16.mxu0 0
    %354 = vmatpush1.bf16.msra.mxu0 0
    %355 = vmatprep.mubr.bf16.mxu0 0
    %356 = vmatmul.mubr.bf16.gmra.mrb[0].mxu0 %v250
    %v357 = vpop.f32.mrb[0].mxu0
    %v358 = vadd.f32 %v273, %v357
    %v359 = vpop.f32.mrb[0].mxu0
    %v360 = vpop.f32.mrb[0].mxu0
    %v361 = vadd.f32 %v273, %v360
    %v362 = vpop.f32.mrb[0].mxu0
    %363 = vmatprep.mubr.bf16.mxu0 0
    %364 = vmatmul.mubr.bf16.gmra.mrb[0].mxu0 %v251
    %v365 = vpop.f32.mrb[0].mxu0
    %v366 = vadd.f32 %v273, %v365
    %v367 = vpop.f32.mrb[0].mxu0
    %v368 = vpop.f32.mrb[0].mxu0
    %v369 = vpop.f32.mrb[0].mxu0
    %370 = vdwg.mxu0
    %v371 = vmul.f32 %v358, %v55
    %v372 = vmul.f32 %v361, %v56
    %v373 = vmul.f32 %v366, %v57
    %v374 = vadd.f32 %v371, %v372
    %v375 = vadd.f32 %v374, %v373
    %v376 = vrot.slane %v375, 4
    %v377 = vadd.f32 %v375, %v376
    %v378 = vrot.slane %v377, 2
    %v379 = vadd.f32 %v377, %v378
    %v380 = vrot.slane %v379, 1
    %v381 = vadd.f32 %v379, %v380
    %v382 = vmul.f32 %v381, %v202
    %v383 = vsub.f32 %v358, %v382
    %v384 = vsub.f32 %v361, %v382
    %v385 = vsub.f32 %v366, %v382
    %v386 = vmul.f32 %v383, %v383
    %v387 = vmul.f32 %v384, %v384
    %v388 = vmul.f32 %v385, %v385
    %v389 = vmul.f32 %v386, %v55
    %v390 = vmul.f32 %v387, %v56
    %v391 = vmul.f32 %v388, %v57
    %v392 = vadd.f32 %v389, %v390
    %v393 = vadd.f32 %v392, %v391
    %v394 = vrot.slane %v393, 4
    %v395 = vadd.f32 %v393, %v394
    %v396 = vrot.slane %v395, 2
    %v397 = vadd.f32 %v395, %v396
    %v398 = vrot.slane %v397, 1
    %v399 = vadd.f32 %v397, %v398
    %v400 = vmul.f32 %v399, %v202
    %v401 = vadd.f32 %v400, 1e-05
    %v402 = vrsqrt.pop %v401
    %v403 = vmul.f32 %v383, %v402
    %v404 = vmul.f32 %v384, %v402
    %v405 = vmul.f32 %v385, %v402
    %v406 = vld [vmem:[%s10] sm:$0x1]
    %v408 = vlaneseq
    %v409 = vshrl.u32 %v408, 7
    %v410 = vsub.s32 0, %v409
    %v411 = vrot.slane %v406, %v410
    %v413 = vmul.f32 %v403, %v411
    %v414 = vmul.f32 %v404, %v411
    %v415 = vmul.f32 %v405, %v411
    %v416 = vld [vmem:[%s11] sm:$0x1]
    %v418 = vlaneseq
    %v419 = vshrl.u32 %v418, 7
    %v420 = vsub.s32 0, %v419
    %v421 = vrot.slane %v416, %v420
    %v423 = vadd.f32 %v413, %v421
    %v424 = vadd.f32 %v414, %v421
    %v425 = vadd.f32 %v415, %v421
    %v426 = vmax.f32 %v423, 0.0
    %v427 = vmax.f32 %v424, 0.0
    %v428 = vmax.f32 %v425, 0.0
    %v429 = vpack.c.bf16 %v427, %v426
    %v430 = vpack.c.bf16 %v428, %v428
    %v431 = vld [vmem:[%s12] sm:$0xf]
    %v432 = vld [vmem:[%s12 + $0x4] sm:$0xf]
    %v433 = vld [vmem:[%s12 + $0x8] sm:$0xf]
    %v434 = vld [vmem:[%s12 + $0xc] sm:$0xf]
    %v435 = vld [vmem:[%s12 + $0x10] sm:$0xf]
    %v436 = vld [vmem:[%s12 + $0x14] sm:$0xf]
    %v437 = vld [vmem:[%s12 + $0x18] sm:$0xf]
    %v438 = vld [vmem:[%s12 + $0x1c] sm:$0xf]
    %v439 = vld [vmem:[%s12 + $0x20] sm:$0xf]
    %v440 = vld [vmem:[%s12 + $0x24] sm:$0xf]
    %v441 = vld [vmem:[%s12 + $0x28] sm:$0xf]
    %v442 = vld [vmem:[%s12 + $0x2c] sm:$0xf]
    %v443 = vld [vmem:[%s12 + $0x30] sm:$0xf]
    %v444 = vld [vmem:[%s12 + $0x34] sm:$0xf]
    %v445 = vld [vmem:[%s12 + $0x38] sm:$0xf]
    %v446 = vld [vmem:[%s12 + $0x3c] sm:$0xf]
    %v447 = vld [vmem:[%s13] sm:$0x1]
    %v449 = vlaneseq
    %v450 = vshrl.u32 %v449, 7
    %v451 = vsub.s32 0, %v450
    %v452 = vrot.slane %v447, %v451
    %v470 = vunpack.c.l.b16 %v431
    %v471 = vunpack.c.l.b16 %v432
    %v472 = vunpack.c.l.b16 %v433
    %v473 = vunpack.c.l.b16 %v434
    %v474 = vunpack.c.l.b16 %v435
    %v475 = vunpack.c.l.b16 %v436
    %v476 = vunpack.c.l.b16 %v437
    %v477 = vunpack.c.l.b16 %v438
    %v478 = vunpack.c.l.b16 %v439
    %v479 = vunpack.c.l.b16 %v440
    %v480 = vunpack.c.l.b16 %v441
    %v481 = vunpack.c.l.b16 %v442
    %v482 = vunpack.c.l.b16 %v443
    %v483 = vunpack.c.l.b16 %v444
    %v484 = vunpack.c.l.b16 %v445
    %v485 = vunpack.c.l.b16 %v446
    %v486 = vpack.c.b16 %v471, %v470
    %v487 = vpack.c.b16 %v473, %v472
    %v488 = vpack.c.b16 %v475, %v474
    %v489 = vpack.c.b16 %v477, %v476
    %v490 = vpack.c.b16 %v479, %v478
    %v491 = vpack.c.b16 %v481, %v480
    %v492 = vpack.c.b16 %v483, %v482
    %v493 = vpack.c.b16 %v485, %v484
    %502 = vmatprep.subr.bf16.mxu0 0
    %503 = vmatpush1.bf16.msra.mxu0 %v486
    %504 = vmatprep.subr.bf16.mxu0 0
    %505 = vmatpush1.bf16.msra.mxu0 %v487
    %506 = vmatprep.subr.bf16.mxu0 0
    %507 = vmatpush1.bf16.msra.mxu0 %v488
    %508 = vmatprep.subr.bf16.mxu0 0
    %509 = vmatpush1.bf16.msra.mxu0 %v489
    %510 = vmatprep.subr.bf16.mxu0 0
    %511 = vmatpush1.bf16.msra.mxu0 %v490
    %512 = vmatprep.subr.bf16.mxu0 0
    %513 = vmatpush1.bf16.msra.mxu0 %v491
    %514 = vmatprep.subr.bf16.mxu0 0
    %515 = vmatpush1.bf16.msra.mxu0 %v492
    %516 = vmatprep.subr.bf16.mxu0 0
    %517 = vmatpush1.bf16.msra.mxu0 %v493
    %518 = vmatprep.subr.bf16.mxu0 0
    %519 = vmatpush1.bf16.msra.mxu0 0
    %520 = vmatprep.subr.bf16.mxu0 0
    %521 = vmatpush1.bf16.msra.mxu0 0
    %522 = vmatprep.subr.bf16.mxu0 0
    %523 = vmatpush1.bf16.msra.mxu0 0
    %524 = vmatprep.subr.bf16.mxu0 0
    %525 = vmatpush1.bf16.msra.mxu0 0
    %526 = vmatprep.subr.bf16.mxu0 0
    %527 = vmatpush1.bf16.msra.mxu0 0
    %528 = vmatprep.subr.bf16.mxu0 0
    %529 = vmatpush1.bf16.msra.mxu0 0
    %530 = vmatprep.subr.bf16.mxu0 0
    %531 = vmatpush1.bf16.msra.mxu0 0
    %532 = vmatprep.subr.bf16.mxu0 0
    %533 = vmatpush1.bf16.msra.mxu0 0
    %534 = vmatprep.mubr.bf16.mxu0 0
    %535 = vmatmul.mubr.bf16.gmra.mrb[0].mxu0 %v429
    %v536 = vpop.f32.mrb[0].mxu0
    %v537 = vadd.f32 %v452, %v536
    %v538 = vpop.f32.mrb[0].mxu0
    %v539 = vpop.f32.mrb[0].mxu0
    %v540 = vadd.f32 %v452, %v539
    %v541 = vpop.f32.mrb[0].mxu0
    %542 = vmatprep.mubr.bf16.mxu0 0
    %543 = vmatmul.mubr.bf16.gmra.mrb[0].mxu0 %v430
    %v544 = vpop.f32.mrb[0].mxu0
    %v545 = vadd.f32 %v452, %v544
    %v546 = vpop.f32.mrb[0].mxu0
    %v547 = vpop.f32.mrb[0].mxu0
    %v548 = vpop.f32.mrb[0].mxu0
    %549 = vdwg.mxu0
    %v550 = vmul.f32 %v537, %v55
    %v551 = vmul.f32 %v540, %v56
    %v552 = vmul.f32 %v545, %v57
    %v553 = vadd.f32 %v550, %v551
    %v554 = vadd.f32 %v553, %v552
    %v555 = vrot.slane %v554, 4
    %v556 = vadd.f32 %v554, %v555
    %v557 = vrot.slane %v556, 2
    %v558 = vadd.f32 %v556, %v557
    %v559 = vrot.slane %v558, 1
    %v560 = vadd.f32 %v558, %v559
    %v561 = vmul.f32 %v560, %v202
    %v562 = vsub.f32 %v537, %v561
    %v563 = vsub.f32 %v540, %v561
    %v564 = vsub.f32 %v545, %v561
    %v565 = vmul.f32 %v562, %v562
    %v566 = vmul.f32 %v563, %v563
    %v567 = vmul.f32 %v564, %v564
    %v568 = vmul.f32 %v565, %v55
    %v569 = vmul.f32 %v566, %v56
    %v570 = vmul.f32 %v567, %v57
    %v571 = vadd.f32 %v568, %v569
    %v572 = vadd.f32 %v571, %v570
    %v573 = vrot.slane %v572, 4
    %v574 = vadd.f32 %v572, %v573
    %v575 = vrot.slane %v574, 2
    %v576 = vadd.f32 %v574, %v575
    %v577 = vrot.slane %v576, 1
    %v578 = vadd.f32 %v576, %v577
    %v579 = vmul.f32 %v578, %v202
    %v580 = vadd.f32 %v579, 1e-05
    %v581 = vrsqrt.pop %v580
    %v582 = vmul.f32 %v562, %v581
    %v583 = vmul.f32 %v563, %v581
    %v584 = vmul.f32 %v564, %v581
    %v585 = vld [vmem:[%s14] sm:$0x1]
    %v587 = vlaneseq
    %v588 = vshrl.u32 %v587, 7
    %v589 = vsub.s32 0, %v588
    %v590 = vrot.slane %v585, %v589
    %v592 = vmul.f32 %v582, %v590
    %v593 = vmul.f32 %v583, %v590
    %v594 = vmul.f32 %v584, %v590
    %v595 = vld [vmem:[%s15] sm:$0x1]
    %v597 = vlaneseq
    %v598 = vshrl.u32 %v597, 7
    %v599 = vsub.s32 0, %v598
    %v600 = vrot.slane %v595, %v599
    %v602 = vadd.f32 %v592, %v600
    %v603 = vadd.f32 %v593, %v600
    %v604 = vadd.f32 %v594, %v600
    %v605 = vmax.f32 %v602, 0.0
    %v606 = vmax.f32 %v603, 0.0
    %v607 = vmax.f32 %v604, 0.0
    %vm608 = vcmp.ge.f32.partialorder %v605, 0.0
    %vm609 = vcmp.ge.f32.partialorder %v606, 0.0
    %vm610 = vcmp.ge.f32.partialorder %v607, 0.0
    %v611 = vmul.f32 %v605, 0.01
    %v612 = vmul.f32 %v606, 0.01
    %v613 = vmul.f32 %v607, 0.01
    %v614 = vsel %vm608, %v605, %v611
    %v615 = vsel %vm609, %v606, %v612
    %v616 = vsel %vm610, %v607, %v613
    %vm617 = vcmp.gt.f32.partialorder %v55, 0.0
    %vm618 = vcmp.gt.f32.partialorder %v56, 0.0
    %vm619 = vcmp.gt.f32.partialorder %v57, 0.0
    %v620 = vld [vmem:[%s3] sm:$0x1]
    %v622 = vlaneseq
    %v623 = vshrl.u32 %v622, 7
    %v624 = vsub.s32 0, %v623
    %v625 = vrot.slane %v620, %v624
    %v627 = vmul.f32 %v614, %v625
    %v628 = vmul.f32 %v615, %v625
    %v629 = vmul.f32 %v616, %v625
    %v630 = vsel %vm617, %v627, 0.0
    %v631 = vsel %vm618, %v628, 0.0
    %v632 = vsel %vm619, %v629, 0.0
    %636 = vrot.lane.b32.xlu0 %v630, 96
    %v637 = vpop.permute.xlu0 %636
    %638 = vrot.lane.b32.xlu0 %v631, 96
    %v639 = vpop.permute.xlu0 %638
    %640 = vrot.lane.b32.xlu0 %v632, 96
    %v641 = vpop.permute.xlu0 %640
    %v645 = vadd.f32 %v630, %v637
    %v646 = vadd.f32 %v631, %v639
    %v647 = vadd.f32 %v632, %v641
    %648 = vrot.lane.b32.xlu0 %v630, 64
    %v649 = vpop.permute.xlu0 %648
    %650 = vrot.lane.b32.xlu0 %v631, 64
    %v651 = vpop.permute.xlu0 %650
    %652 = vrot.lane.b32.xlu0 %v632, 64
    %v653 = vpop.permute.xlu0 %652
    %v657 = vadd.f32 %v645, %v649
    %v658 = vadd.f32 %v646, %v651
    %v659 = vadd.f32 %v647, %v653
    %660 = vrot.lane.b32.xlu0 %v630, 32
    %v661 = vpop.permute.xlu0 %660
    %662 = vrot.lane.b32.xlu0 %v631, 32
    %v663 = vpop.permute.xlu0 %662
    %664 = vrot.lane.b32.xlu0 %v632, 32
    %v665 = vpop.permute.xlu0 %664
    %v669 = vadd.f32 %v657, %v661
    %v670 = vadd.f32 %v658, %v663
    %v671 = vadd.f32 %v659, %v665
    %v672 = vld [vmem:[%s2] sm:$0xf]
    %v673 = vld [vmem:[%s2 + $0x4] sm:$0xf]
    %v674 = vpack.c.bf16 %v670, %v669
    %v675 = vpack.c.bf16 %v671, %v671
    %v678 = vunpack.c.l.b16 %v672
    %v679 = vunpack.c.l.b16 %v673
    %v680 = vpack.c.b16 %v679, %v678
    %vm681 = vcmask 195584
    %v683 = vsel %vm681, %v680, 0
    %vm685 = vcmask 1043456
    %v687 = vsel %vm685, %v675, 0
    %689 = vmatprep.subr.bf16.mxu0 0
    %690 = vmatpush1.bf16.msra.mxu0 %v674
    %691 = vmatprep.subr.bf16.mxu0 0
    %692 = vmatpush1.bf16.msra.mxu0 %v687
    %693 = vmatprep.subr.bf16.mxu0 0
    %694 = vmatpush1.bf16.msra.mxu0 0
    %695 = vmatprep.subr.bf16.mxu0 0
    %696 = vmatpush1.bf16.msra.mxu0 0
    %697 = vmatprep.subr.bf16.mxu0 0
    %698 = vmatpush1.bf16.msra.mxu0 0
    %699 = vmatprep.subr.bf16.mxu0 0
    %700 = vmatpush1.bf16.msra.mxu0 0
    %701 = vmatprep.subr.bf16.mxu0 0
    %702 = vmatpush1.bf16.msra.mxu0 0
    %703 = vmatprep.subr.bf16.mxu0 0
    %704 = vmatpush1.bf16.msra.mxu0 0
    %705 = vmatprep.subr.bf16.mxu0 0
    %706 = vmatpush1.bf16.msra.mxu0 0
    %707 = vmatprep.subr.bf16.mxu0 0
    %708 = vmatpush1.bf16.msra.mxu0 0
    %709 = vmatprep.subr.bf16.mxu0 0
    %710 = vmatpush1.bf16.msra.mxu0 0
    %711 = vmatprep.subr.bf16.mxu0 0
    %712 = vmatpush1.bf16.msra.mxu0 0
    %713 = vmatprep.subr.bf16.mxu0 0
    %714 = vmatpush1.bf16.msra.mxu0 0
    %715 = vmatprep.subr.bf16.mxu0 0
    %716 = vmatpush1.bf16.msra.mxu0 0
    %717 = vmatprep.subr.bf16.mxu0 0
    %718 = vmatpush1.bf16.msra.mxu0 0
    %719 = vmatprep.subr.bf16.mxu0 0
    %720 = vmatpush1.bf16.msra.mxu0 0
    %721 = vmatprep.mubr.bf16.mxu0 0
    %722 = vmatmul.mubr.bf16.gmra.mrb[0].mxu0 %v683
    %v723 = vpop.f32.mrb[0].mxu0
    %v724 = vadd.f32 0.0, %v723
    %v725 = vpop.f32.mrb[0].mxu0
    %v726 = vpop.f32.mrb[0].mxu0
    %v727 = vadd.f32 0.0, %v726
    %v728 = vpop.f32.mrb[0].mxu0
    %729 = vdwg.mxu0
    %vm730 = vcmask 261120
    %731 = vst.msk [vmem:[#allocation2] sm:$0xff] %vm730, %v724
    %732 = vst.msk [vmem:[#allocation2 + $0x8] sm:$0xff] %vm730, %v727
    // Predicated region
    $region66: #{smodel_forward.5} parent=1 // pred_check
      _
    $region67: #{smodel_forward.5} parent=1 // pred_check_branch
      %734 = sbr.rel (0) target = $region69
    $region68: #{smodel_forward.5} parent=1 // pred_region
      %s736 = ssub.s32 256, 256
      %737 = vsyncadd [#allocation3], %s736
      %s738 = sshll.u32 [#allocation2], 4
      %s739 = int_to_ptr.vmem [resolvable:$true] %s738
      %744 = dma.vmem_to_hbm [thread:$0]  %s739, 256, %s16, [#allocation3], 128, 128, 8
    $region69: #{smodel_forward.5} parent=1 // pred_fallthru
      _
    // Predicated region
    $region70: #{smodel_forward.5} parent=1 // pred_check
      _
    $region71: #{smodel_forward.5} parent=1 // pred_check_branch
      %746 = sbr.rel (0) target = $region73
    $region72: #{smodel_forward.5} parent=1 // pred_region
      %747 = dma.done [#allocation3], 256
    $region73: #{smodel_forward.5} parent=1 // pred_fallthru
      _
    %748 = vsyncpa [#allocation3], 1

</llo_original>
